<compile_context>
chip_gen: v5e
topology: v5e:2x2
jax: 0.10.0
libtpu: 0.0.40
codegen_flags: <defaults>
</compile_context>

<pallas_src>
import jax
import jax.numpy as jnp
from jax.experimental import pallas as pl
from jax.experimental.pallas import tpu as pltpu


def _nonlocal_kernel(x_ref, wq_ref, wk_ref, wv_ref, bq_ref, bk_ref, bv_ref,
                     gamma_ref, o_ref, k_scr, vt_scr):
    # Shapes (batch dim squeezed by the BlockSpec):
    #   x_ref : [C, N]    full spatial extent for this batch element (f32)
    #   wq/wk : [Cq, C]   wv: [C, C]      (PyTorch [Cout, Cin] layout)
    #   bq/bk : [Cq, 1]   bv: [1, C]
    #   gamma : SMEM [1]
    #   o_ref : [C, TQ]   query/output tile (lane-dense along spatial axis)
    #   k_scr : [Cq, N] f32    vt_scr: [N, C] bf16   persist across tiles
    i = pl.program_id(1)
    tq = o_ref.shape[1]

    # Compute K and V^T projections once per batch element (query-tile 0).
    @pl.when(i == 0)
    def _():
        xf = x_ref[...]                                           # [C, N]
        # K projection stays f32: feeds the softmax logits and its flop count
        # (Cq*C*N) is ~1/8 of the V projection.
        k_scr[...] = (jnp.dot(wk_ref[...], xf,
                              preferred_element_type=jnp.float32)
                      + bk_ref[...])
        # V projection on bf16 MXU operands, f32 accumulation. Store it
        # TRANSPOSED once per batch so the big per-tile PV matmul is a plain
        # (last-dim x first-dim) contraction — no [TQ, N] transpose per tile.
        v = (jnp.dot(wv_ref[...].astype(jnp.bfloat16),
                     xf.astype(jnp.bfloat16),
                     preferred_element_type=jnp.float32)
             + bv_ref[...].T)                                     # [C, N] f32
        vt_scr[...] = v.T.astype(jnp.bfloat16)                    # [N, C] bf16

    if tq % 128 == 0:
        col = pl.multiple_of(i * tq, 128)
    else:
        col = i * tq
    x_q = x_ref[:, pl.ds(col, tq)]                                # [C, TQ]

    # Q projection + QK^T logits in f32 (tiny contraction depth Cq).
    q = (jnp.dot(wq_ref[...], x_q, preferred_element_type=jnp.float32)
         + bq_ref[...])                                           # [Cq, TQ]
    s = pl.dot(q, k_scr[...], trans_a=True)                       # [TQ, N]
    s = s - jnp.max(s, axis=-1, keepdims=True)
    p = jnp.exp(s)                                                # [TQ, N] f32
    l = jnp.sum(p, axis=-1, keepdims=True)                        # [TQ, 1]

    # Unnormalized PV on bf16 operands (dominant N^2*C GEMM), f32 accumulate;
    # softmax normalization deferred to a per-query reciprocal of the [TQ, C]
    # result (EUP slot, approx) instead of TQ*N VPU divides.
    o_t = jnp.dot(p.astype(jnp.bfloat16), vt_scr[...],
                  preferred_element_type=jnp.float32)             # [TQ, C]
    o_t = o_t * pl.reciprocal(l, approx=True)

    gamma = gamma_ref[0]
    # Only the small [TQ, C] result is transposed for the lane-dense store.
    o_ref[...] = (gamma * o_t.T + x_q).astype(o_ref.dtype)


def _pick_query_tile(n, c, cq):
    """Largest 128-multiple divisor of N (<=512) whose footprint fits budget."""
    cands = [t for t in (512, 384, 256, 128) if n % t == 0]
    if not cands:
        # TODO(synk): mask ragged query tiles / pad N instead of one big tile.
        return n
    # Fixed per-kernel VMEM (independent of TQ): double-buffered x + weights,
    # K scratch (f32) and V^T scratch (bf16).
    fixed = 4 * (2 * c * n + 2 * (2 * cq * c + c * c) + cq * n) + 2 * n * c
    budget = 40 * (1 << 20)   # headroom under v7x's 64 MiB physical VMEM
    for t in cands:
        live = (fixed
                + t * n * (4 + 2)                       # f32 score + bf16 p
                + 4 * (2 * c * t + 3 * t * c + cq * t))  # out bufs + temps
        if fixed + 0 <= budget and live <= budget:
            return t
    return cands[-1]


@jax.jit
def nonlocal_block_forward(x, wq, bq, wk, bk, wv, bv, gamma):
    """Fused NonlocalBlock forward.

    x:  [B, C, W, H] float32
    wq, wk: [C//8, C]; wv: [C, C]   (1x1 conv weights, PyTorch layout)
    bq, bk: [C//8];    bv: [C]
    gamma: scalar
    returns [B, C, W, H]
    """
    B, C, W, H = x.shape
    N = W * H
    Cq = wq.shape[0]
    x_flat = x.reshape(B, C, N)

    TQ = _pick_query_tile(N, C, Cq)
    NQ = N // TQ

    gamma_arr = jnp.asarray(gamma, jnp.float32).reshape(1)
    bq2 = bq.reshape(Cq, 1)
    bk2 = bk.reshape(Cq, 1)
    bv2 = bv.reshape(1, C)

    flops_per_b = 2 * N * C * (2 * Cq + C) + 2 * N * N * (Cq + C)
    cost = pl.CostEstimate(
        flops=int(B * flops_per_b),
        transcendentals=int(B * (N * N + N)),
        bytes_accessed=int(4 * (2 * B * C * N + (2 * Cq + C) * C
                                + 2 * Cq + C + 1)),
    )

    # Explicit scoped-VMEM limit (v5e default ~16 MiB is too small at
    # realistic N); conservative estimate of kernel-resident bytes.
    est = (4 * (2 * C * N + 2 * (2 * Cq * C + C * C) + 2 * C * TQ + Cq * N)
           + 2 * N * C
           + TQ * N * (4 + 2)
           + 4 * (Cq * TQ + 3 * TQ * C))
    vmem_limit = int(min(100 * (1 << 20), max(32 * (1 << 20), 2 * est)))

    out_flat = pl.pallas_call(
        _nonlocal_kernel,
        out_shape=jax.ShapeDtypeStruct((B, C, N), x.dtype),
        grid_spec=pltpu.PrefetchScalarGridSpec(
            num_scalar_prefetch=0,
            grid=(B, NQ),
            in_specs=[
                pl.BlockSpec((None, C, N), lambda b, i: (b, 0, 0)),   # x
                pl.BlockSpec((Cq, C), lambda b, i: (0, 0)),           # wq
                pl.BlockSpec((Cq, C), lambda b, i: (0, 0)),           # wk
                pl.BlockSpec((C, C), lambda b, i: (0, 0)),            # wv
                pl.BlockSpec((Cq, 1), lambda b, i: (0, 0)),           # bq
                pl.BlockSpec((Cq, 1), lambda b, i: (0, 0)),           # bk
                pl.BlockSpec((1, C), lambda b, i: (0, 0)),            # bv
                pl.BlockSpec(memory_space=pltpu.MemorySpace.SMEM),    # gamma
            ],
            out_specs=pl.BlockSpec((None, C, TQ), lambda b, i: (b, 0, i)),
            scratch_shapes=[
                pltpu.VMEM((Cq, N), jnp.float32),    # K projection (f32)
                pltpu.VMEM((N, C), jnp.bfloat16),    # V^T projection (bf16)
            ],
        ),
        compiler_params=pltpu.CompilerParams(
            dimension_semantics=("parallel", "arbitrary"),
            vmem_limit_bytes=vmem_limit,
        ),
        cost_estimate=cost,
    )(x_flat, wq, wk, wv, bq2, bk2, bv2, gamma_arr)

    return out_flat.reshape(B, C, W, H)


def nonlocal_ref(x, wq, bq, wk, bk, wv, bv, gamma):
    """Pure-JAX reference matching the PyTorch NonlocalBlock forward."""
    B, C, W, H = x.shape
    N = W * H
    xf = x.reshape(B, C, N)
    q = jnp.einsum("oc,bcn->bon", wq, xf) + bq[None, :, None]
    k = jnp.einsum("oc,bcn->bon", wk, xf) + bk[None, :, None]
    v = jnp.einsum("oc,bcn->bon", wv, xf) + bv[None, :, None]
    energy = jnp.einsum("bci,bcj->bij", q, k)            # [B, N, N]
    attn = jax.nn.softmax(energy, axis=-1)
    out = jnp.einsum("bcj,bij->bci", v, attn)            # [B, C, N]
    out = gamma * out + xf
    return out.reshape(B, C, W, H)


def init_nonlocal_params(key, in_dim):
    """Deterministic init mimicking torch.nn.Conv2d(k=1) default U(-1/sqrt(Cin), .)."""
    kq, kk, kv, kbq, kbk, kbv = jax.random.split(key, 6)
    cq = in_dim // 8
    bound = 1.0 / jnp.sqrt(jnp.float32(in_dim))
    wq = jax.random.uniform(kq, (cq, in_dim), jnp.float32, -bound, bound)
    wk = jax.random.uniform(kk, (cq, in_dim), jnp.float32, -bound, bound)
    wv = jax.random.uniform(kv, (in_dim, in_dim), jnp.float32, -bound, bound)
    bq = jax.random.uniform(kbq, (cq,), jnp.float32, -bound, bound)
    bk = jax.random.uniform(kbk, (cq,), jnp.float32, -bound, bound)
    bv = jax.random.uniform(kbv, (in_dim,), jnp.float32, -bound, bound)
    return wq, bq, wk, bk, wv, bv


if __name__ == "__main__":
    key = jax.random.PRNGKey(0)
    k_x, k_p = jax.random.split(key)

    B, C, W, H = 2, 32, 16, 16              # C//8 = 4, N = 256
    x = jax.random.normal(k_x, (B, C, W, H), jnp.float32)
    wq, bq, wk, bk, wv, bv = init_nonlocal_params(k_p, C)
    # The PyTorch module initializes gamma to 0 (out == x); use a nonzero
    # value so the attention path is actually exercised and checked.
    gamma = jnp.float32(0.5)

    out = nonlocal_block_forward(x, wq, bq, wk, bk, wv, bv, gamma)
    out = jax.block_until_ready(out)

    ref = nonlocal_ref(x, wq, bq, wk, bk, wv, bv, gamma)
    assert out.shape == (B, C, W, H)
    max_err = float(jnp.max(jnp.abs(out - ref)))
    # Tolerance covers bf16 MXU operands (V / PV matmuls) with f32 accumulation
    # plus the approx reciprocal, vs. the XLA default-precision f32 reference.
    assert jnp.allclose(out, ref, atol=1e-2, rtol=1e-2), \
        f"mismatch, max_err={max_err}"

    # Sanity: gamma = 0 must reduce to the identity (matches torch init).
    out0 = jax.block_until_ready(
        nonlocal_block_forward(x, wq, bq, wk, bk, wv, bv, jnp.float32(0.0)))
    assert jnp.allclose(out0, x, atol=1e-6, rtol=1e-6), "gamma=0 identity failed"

    print("KERNEL_OK")
</pallas_src>

<mosaic_0001>
module attributes {stable_mosaic.version = 11 : i64} {
  func.func @_nonlocal_kernel(%arg0: i32, %arg1: i32, %arg2: memref<1x32x256xf32, #tpu.memory_space<vmem>>, %arg3: memref<4x32xf32, #tpu.memory_space<vmem>>, %arg4: memref<4x32xf32, #tpu.memory_space<vmem>>, %arg5: memref<32x32xf32, #tpu.memory_space<vmem>>, %arg6: memref<4x1xf32, #tpu.memory_space<vmem>>, %arg7: memref<4x1xf32, #tpu.memory_space<vmem>>, %arg8: memref<1x32xf32, #tpu.memory_space<vmem>>, %arg9: memref<1xf32, #tpu.memory_space<smem>>, %arg10: memref<1x32x256xf32, #tpu.memory_space<vmem>>, %arg11: memref<4x256xf32, #tpu.memory_space<vmem>>, %arg12: memref<256x32xbf16, #tpu.memory_space<vmem>>) attributes {dimension_semantics = [#tpu.dimension_semantics<parallel>, #tpu.dimension_semantics<arbitrary>], iteration_bounds = array<i64: 2, 1>, scalar_prefetch = 0 : i64, scratch_operands = 2 : i64, tpu.core_type = #tpu.core_type<tc>, window_params = [{transform_indices = @transform_0, window_bounds = array<i64: 1, 32, 256>}, {pipeline_mode = #tpu.pipeline_mode<synchronous>, transform_indices = @transform_1, window_bounds = array<i64: 4, 32>}, {pipeline_mode = #tpu.pipeline_mode<synchronous>, transform_indices = @transform_2, window_bounds = array<i64: 4, 32>}, {pipeline_mode = #tpu.pipeline_mode<synchronous>, transform_indices = @transform_3, window_bounds = array<i64: 32, 32>}, {pipeline_mode = #tpu.pipeline_mode<synchronous>, transform_indices = @transform_4, window_bounds = array<i64: 4, 1>}, {pipeline_mode = #tpu.pipeline_mode<synchronous>, transform_indices = @transform_5, window_bounds = array<i64: 4, 1>}, {pipeline_mode = #tpu.pipeline_mode<synchronous>, transform_indices = @transform_6, window_bounds = array<i64: 1, 32>}, {transform_indices = @transform_7, window_bounds = array<i64: 1>}, {transform_indices = @transform_8, window_bounds = array<i64: 1, 32, 256>}]} {
    %c0_i32 = arith.constant 0 : i32
    %0 = arith.cmpi eq, %arg1, %c0_i32 : i32
    %1 = arith.extui %0 : i1 to i32
    %c0_i32_0 = arith.constant 0 : i32
    %2 = arith.cmpi ne, %1, %c0_i32_0 : i32
    scf.if %2 {
      %c0_18 = arith.constant 0 : index
      %c0_19 = arith.constant 0 : index
      %c0_20 = arith.constant 0 : index
      %36 = vector.load %arg2[%c0_18, %c0_19, %c0_20] : memref<1x32x256xf32, #tpu.memory_space<vmem>>, vector<1x32x256xf32>
      %37 = vector.shape_cast %36 : vector<1x32x256xf32> to vector<32x256xf32>
      %c0_21 = arith.constant 0 : index
      %c0_22 = arith.constant 0 : index
      %38 = vector.load %arg4[%c0_21, %c0_22] : memref<4x32xf32, #tpu.memory_space<vmem>>, vector<4x32xf32>
      %cst_23 = arith.constant dense<0.000000e+00> : vector<4x256xf32>
      %39 = tpu.matmul %38, %37, %cst_23 {dimension_numbers = #tpu.dot_dimension_numbers<[1], [0], [0], [1], [0, 0, 1, 1], [], []>} : vector<4x32xf32>, vector<32x256xf32>, vector<4x256xf32> -> vector<4x256xf32>
      %c0_24 = arith.constant 0 : index
      %c0_25 = arith.constant 0 : index
      %40 = vector.load %arg7[%c0_24, %c0_25] : memref<4x1xf32, #tpu.memory_space<vmem>>, vector<4x1xf32>
      %41 = vector.broadcast %40 : vector<4x1xf32> to vector<4x256xf32>
      %42 = arith.addf %39, %41 : vector<4x256xf32>
      %c0_26 = arith.constant 0 : index
      %c0_27 = arith.constant 0 : index
      %43 = vector.load %arg11[%c0_26, %c0_27] : memref<4x256xf32, #tpu.memory_space<vmem>>, vector<4x256xf32>
      tpu.vector_store %arg11[%c0_26, %c0_27], %42 {strides = array<i32>} : memref<4x256xf32, #tpu.memory_space<vmem>>, vector<4x256xf32>,
      %c0_28 = arith.constant 0 : index
      %c0_29 = arith.constant 0 : index
      %44 = vector.load %arg5[%c0_28, %c0_29] : memref<32x32xf32, #tpu.memory_space<vmem>>, vector<32x32xf32>
      %45 = arith.truncf %44 : vector<32x32xf32> to vector<32x32xbf16>
      %46 = arith.truncf %37 : vector<32x256xf32> to vector<32x256xbf16>
      %cst_30 = arith.constant dense<0.000000e+00> : vector<32x256xf32>
      %47 = tpu.matmul %45, %46, %cst_30 {dimension_numbers = #tpu.dot_dimension_numbers<[1], [0], [0], [1], [0, 0, 1, 1], [], []>} : vector<32x32xbf16>, vector<32x256xbf16>, vector<32x256xf32> -> vector<32x256xf32>
      %c0_31 = arith.constant 0 : index
      %c0_32 = arith.constant 0 : index
      %48 = vector.load %arg8[%c0_31, %c0_32] : memref<1x32xf32, #tpu.memory_space<vmem>>, vector<1x32xf32>
      %49 = tpu.transpose %48, [1, 0] : vector<1x32xf32> -> vector<32x1xf32>
      %50 = vector.broadcast %49 : vector<32x1xf32> to vector<32x256xf32>
      %51 = arith.addf %47, %50 : vector<32x256xf32>
      %52 = tpu.transpose %51, [1, 0] : vector<32x256xf32> -> vector<256x32xf32>
      %53 = arith.truncf %52 : vector<256x32xf32> to vector<256x32xbf16>
      %c0_33 = arith.constant 0 : index
      %c0_34 = arith.constant 0 : index
      %54 = vector.load %arg12[%c0_33, %c0_34] : memref<256x32xbf16, #tpu.memory_space<vmem>>, vector<256x32xbf16>
      tpu.vector_store %arg12[%c0_33, %c0_34], %53 {strides = array<i32>} : memref<256x32xbf16, #tpu.memory_space<vmem>>, vector<256x32xbf16>,
    } else {
    }
    %c256_i32 = arith.constant 256 : i32
    %3 = arith.muli %arg1, %c256_i32 : i32
    %4 = tpu.assume_multiple %3, 128 : i32
    %c0 = arith.constant 0 : index
    %c0_1 = arith.constant 0 : index
    %5 = arith.index_cast %4 : i32 to index
    %6 = vector.load %arg2[%c0, %c0_1, %5] : memref<1x32x256xf32, #tpu.memory_space<vmem>>, vector<1x32x256xf32>
    %7 = vector.shape_cast %6 : vector<1x32x256xf32> to vector<32x256xf32>
    %c0_2 = arith.constant 0 : index
    %c0_3 = arith.constant 0 : index
    %8 = vector.load %arg3[%c0_2, %c0_3] : memref<4x32xf32, #tpu.memory_space<vmem>>, vector<4x32xf32>
    %cst = arith.constant dense<0.000000e+00> : vector<4x256xf32>
    %9 = tpu.matmul %8, %7, %cst {dimension_numbers = #tpu.dot_dimension_numbers<[1], [0], [0], [1], [0, 0, 1, 1], [], []>} : vector<4x32xf32>, vector<32x256xf32>, vector<4x256xf32> -> vector<4x256xf32>
    %c0_4 = arith.constant 0 : index
    %c0_5 = arith.constant 0 : index
    %10 = vector.load %arg6[%c0_4, %c0_5] : memref<4x1xf32, #tpu.memory_space<vmem>>, vector<4x1xf32>
    %11 = vector.broadcast %10 : vector<4x1xf32> to vector<4x256xf32>
    %12 = arith.addf %9, %11 : vector<4x256xf32>
    %c0_6 = arith.constant 0 : index
    %c0_7 = arith.constant 0 : index
    %13 = vector.load %arg11[%c0_6, %c0_7] : memref<4x256xf32, #tpu.memory_space<vmem>>, vector<4x256xf32>
    %cst_8 = arith.constant dense<0.000000e+00> : vector<256x256xf32>
    %14 = tpu.matmul %12, %13, %cst_8 {dimension_numbers = #tpu.dot_dimension_numbers<[0], [0], [1], [1], [0, 1, 1, 1], [], []>} : vector<4x256xf32>, vector<4x256xf32>, vector<256x256xf32> -> vector<256x256xf32>
    %cst_9 = arith.constant dense<0xFF800000> : vector<256xf32>
    %15 = vector.multi_reduction <maximumf>, %14, %cst_9 [1] : vector<256x256xf32> to vector<256xf32>
    %16 = vector.shape_cast %15 : vector<256xf32> to vector<256x1xf32>
    %17 = vector.broadcast %16 : vector<256x1xf32> to vector<256x256xf32>
    %18 = arith.subf %14, %17 : vector<256x256xf32>
    %19 = math.exp %18 : vector<256x256xf32>
    %cst_10 = arith.constant dense<0.000000e+00> : vector<256xf32>
    %20 = vector.multi_reduction <add>, %19, %cst_10 [1] : vector<256x256xf32> to vector<256xf32>
    %21 = vector.shape_cast %20 : vector<256xf32> to vector<256x1xf32>
    %22 = arith.truncf %19 : vector<256x256xf32> to vector<256x256xbf16>
    %c0_11 = arith.constant 0 : index
    %c0_12 = arith.constant 0 : index
    %23 = vector.load %arg12[%c0_11, %c0_12] : memref<256x32xbf16, #tpu.memory_space<vmem>>, vector<256x32xbf16>
    %cst_13 = arith.constant dense<0.000000e+00> : vector<256x32xf32>
    %24 = tpu.matmul %22, %23, %cst_13 {dimension_numbers = #tpu.dot_dimension_numbers<[1], [0], [0], [1], [0, 0, 1, 1], [], []>} : vector<256x256xbf16>, vector<256x32xbf16>, vector<256x32xf32> -> vector<256x32xf32>
    %25 = tpu.reciprocal %21 {approx = true} : vector<256x1xf32> -> vector<256x1xf32>
    %26 = vector.broadcast %25 : vector<256x1xf32> to vector<256x32xf32>
    %27 = arith.mulf %24, %26 : vector<256x32xf32>
    %c0_14 = arith.constant 0 : index
    %28 = memref.load %arg9[%c0_14] : memref<1xf32, #tpu.memory_space<smem>>
    %29 = tpu.transpose %27, [1, 0] : vector<256x32xf32> -> vector<32x256xf32>
    %30 = vector.broadcast %28 : f32 to vector<32x256xf32>
    %31 = arith.mulf %30, %29 : vector<32x256xf32>
    %32 = arith.addf %31, %7 : vector<32x256xf32>
    %c0_15 = arith.constant 0 : index
    %c0_16 = arith.constant 0 : index
    %c0_17 = arith.constant 0 : index
    %33 = vector.load %arg10[%c0_15, %c0_16, %c0_17] : memref<1x32x256xf32, #tpu.memory_space<vmem>>, vector<1x32x256xf32>
    %34 = vector.shape_cast %33 : vector<1x32x256xf32> to vector<32x256xf32>
    %35 = vector.shape_cast %32 : vector<32x256xf32> to vector<1x32x256xf32>
    tpu.vector_store %arg10[%c0_15, %c0_16, %c0_17], %35 {strides = array<i32>} : memref<1x32x256xf32, #tpu.memory_space<vmem>>, vector<1x32x256xf32>,
    return
  }
  func.func @transform_0(%arg0: i32, %arg1: i32) -> (i32, i32, i32) {
    %c0_i32 = arith.constant 0 : i32
    %c0_i32_0 = arith.constant 0 : i32
    %c0_i32_1 = arith.constant 0 : i32
    return %arg0, %c0_i32, %c0_i32_0 : i32, i32, i32
  }
  func.func @transform_1(%arg0: i32, %arg1: i32) -> (i32, i32) {
    %c0_i32 = arith.constant 0 : i32
    %c0_i32_0 = arith.constant 0 : i32
    %c0_i32_1 = arith.constant 0 : i32
    return %c0_i32, %c0_i32_0 : i32, i32
  }
  func.func @transform_2(%arg0: i32, %arg1: i32) -> (i32, i32) {
    %c0_i32 = arith.constant 0 : i32
    %c0_i32_0 = arith.constant 0 : i32
    %c0_i32_1 = arith.constant 0 : i32
    return %c0_i32, %c0_i32_0 : i32, i32
  }
  func.func @transform_3(%arg0: i32, %arg1: i32) -> (i32, i32) {
    %c0_i32 = arith.constant 0 : i32
    %c0_i32_0 = arith.constant 0 : i32
    %c0_i32_1 = arith.constant 0 : i32
    return %c0_i32, %c0_i32_0 : i32, i32
  }
  func.func @transform_4(%arg0: i32, %arg1: i32) -> (i32, i32) {
    %c0_i32 = arith.constant 0 : i32
    %c0_i32_0 = arith.constant 0 : i32
    %c0_i32_1 = arith.constant 0 : i32
    return %c0_i32, %c0_i32_0 : i32, i32
  }
  func.func @transform_5(%arg0: i32, %arg1: i32) -> (i32, i32) {
    %c0_i32 = arith.constant 0 : i32
    %c0_i32_0 = arith.constant 0 : i32
    %c0_i32_1 = arith.constant 0 : i32
    return %c0_i32, %c0_i32_0 : i32, i32
  }
  func.func @transform_6(%arg0: i32, %arg1: i32) -> (i32, i32) {
    %c0_i32 = arith.constant 0 : i32
    %c0_i32_0 = arith.constant 0 : i32
    %c0_i32_1 = arith.constant 0 : i32
    return %c0_i32, %c0_i32_0 : i32, i32
  }
  func.func @transform_7(%arg0: i32, %arg1: i32) -> i32 {
    %c0_i32 = arith.constant 0 : i32
    %c0_i32_0 = arith.constant 0 : i32
    return %c0_i32 : i32
  }
  func.func @transform_8(%arg0: i32, %arg1: i32) -> (i32, i32, i32) {
    %c0_i32 = arith.constant 0 : i32
    %c0_i32_0 = arith.constant 0 : i32
    return %arg0, %c0_i32, %arg1 : i32, i32, i32
  }
}

</mosaic_0001>

<llo_original>
// kernel: nonlocal_block_forward.1
$region0: #{nonlocal_block_forward.1}
  #allocation0 [shape = 'u32[]', space=smem, size = 0x4, offset = 0x4, fixed_abs, tag = 'smem constant byte address 0x4 - core index']
  #allocation1 [shape = 'u32[72,128]{1,0:T(1,128)}', space=vmem, size = 0x9000, scoped, tag = 'internal scratch']
  #allocation2 [shape = 'f32[4,256]{1,0:T(4,128)}', space=vmem, size = 0x1000, scoped, tag = 'scratch operand']
  #allocation3 [shape = 'bf16[256,32]{1,0:T(8,128)(2,1)}', space=vmem, size = 0x10000, scoped, tag = 'scratch operand']
  #allocation4 [shape = 'f32[1]{0:T(128)S(6)}', space=smem, size = 0x200, scoped, tag = 'scoped memory for nonlocal_block_forward.1']
  %s0 = inlined_call_operand.vmem [shape: f32[2,32,256], index: 0, kind: input, shape index: {}]
  %s1 = inlined_call_operand.vmem [shape: f32[4,32], index: 1, kind: input, shape index: {}]
  %s2 = inlined_call_operand.vmem [shape: f32[4,32], index: 2, kind: input, shape index: {}]
  %s3 = inlined_call_operand.vmem [shape: f32[32,32], index: 3, kind: input, shape index: {}]
  %s4 = inlined_call_operand.vmem [shape: f32[4,1], index: 4, kind: input, shape index: {}]
  %s5 = inlined_call_operand.vmem [shape: f32[4,1], index: 5, kind: input, shape index: {}]
  %s6 = inlined_call_operand.vmem [shape: f32[1,32], index: 6, kind: input, shape index: {}]
  %s7 = inlined_call_operand.<no memory space> [shape: f32[1], index: 7, kind: input, shape index: {}]
  %s8 = inlined_call_operand.vmem [shape: f32[2,32,256], index: 8, kind: output, shape index: {}]
  %s9 = sld [smem:[#allocation0]]
  $region69: #{nonlocal_block_forward.1} parent=0
    _
  %s11 = ssub.s32 1, %s9
  %s12 = scalar_select 0, %s11, %s9
  %13 = sst [smem:[#allocation4]] %s7
  loop: start=0, step=1, limit=4
  $region2: #{nonlocal_block_forward.1} parent=0 // loop_pre_header
    _
  $region3: #{nonlocal_block_forward.1} parent=0 // loop_header
    %s15 = sphi 0, %s19
    %p16 = scmp.ge.s32.totalorder %s15, 4
    %s22 = sphi 0, %s34
    %s23 = sphi 0, %s30
    %s24 = sphi 0, %s22
    %s25 = sphi 0, %s23
    %s26 = sphi 0, %s24
    %s27 = sphi 0, %s25
    %s37 = sphi 0, %s39
    %s40 = sphi 0, %s37
    %s41 = sphi 0, %s40
    %s57 = sphi 0, %s41
    %s61 = sphi 0, %s61
    %s63 = sphi 0, %s61
    %s64 = sphi 0, %s63
    %s78 = sphi 0, %s64
    %s82 = sphi 0, %s82
    %s84 = sphi 0, %s82
    %s85 = sphi 0, %s84
    %s99 = sphi 0, %s85
    %s103 = sphi 0, %s103
    %s105 = sphi 0, %s103
    %s106 = sphi 0, %s105
    %s120 = sphi 0, %s106
    %s124 = sphi 0, %s124
    %s126 = sphi 0, %s124
    %s127 = sphi 0, %s126
    %s141 = sphi 0, %s127
    %s145 = sphi 0, %s145
    %s147 = sphi 0, %s145
    %s148 = sphi 0, %s147
    %s162 = sphi 0, %s148
    %s166 = sphi 0, %s166
    %s168 = sphi 0, %s166
    %s169 = sphi 0, %s168
    %s183 = sphi 0, %s169
    %s187 = sphi 0, %s187
    %s189 = sphi 0, %s187
    %s190 = sphi 0, %s189
    %s204 = sphi 0, %s190
    %s212 = sphi 0, %s214
    %s215 = sphi 0, %s212
    %s216 = sphi 0, %s215
    %s232 = sphi 0, %s216
  $region4: #{nonlocal_block_forward.1} parent=0 // loop_header_branch
    %18 = sbr.rel (%p16) target = $region8
  $region5: #{nonlocal_block_forward.1} parent=0 // loop_body
    %s20 = ssub.s32 %s15, 1
    %s21 = ssub.s32 %s15, 2
    %s28 = sadd.s32 1, %s23
    %p29 = scmp.ge.s32.totalorder %s28, 1
    %s30 = scalar_select %p29, 0, %s28
    %s31 = sadd.s32 1, %s22
    %s32 = scalar_select %p29, %s31, %s22
    %p33 = scmp.ge.s32.totalorder %s32, 2
    %s34 = scalar_select %p33, 0, %s32
    %s35 = ssub.s32 %s22, %s34
    %p36 = scmp.eq.s32.totalorder %s35, 0
    %s38 = sadd.s32 %s37, 1
    %s39 = scalar_select %p36, %s37, %s38
    %p42 = pneg %p36
    %p43 = scmp.eq.s32.totalorder %s15, 1
    %p44 = por %p42, %p43
    %p45 = scmp.ne.s32.totalorder %s37, %s40
    %p46 = scmp.eq.s32.totalorder %s15, 0
    %p47 = por %p45, %p46
    %p48 = scmp.ne.s32.totalorder %s37, %s40
    %p49 = scmp.eq.s32.totalorder %s20, 1
    %p50 = por %p48, %p49
    %p51 = scmp.ne.s32.totalorder %s40, %s41
    %p52 = scmp.eq.s32.totalorder %s20, 0
    %p53 = por %p51, %p52
    %p54 = scmp.ne.s32.totalorder %s40, %s41
    %p55 = scmp.eq.s32.totalorder %s21, 1
    %p56 = por %p54, %p55
    %p58 = scmp.ne.s32.totalorder %s41, %s57
    %p59 = scmp.eq.s32.totalorder %s21, 0
    %p60 = por %p58, %p59
    %s62 = sadd.s32 %s61, 1
    %p65 = scmp.eq.s32.totalorder %s15, 1
    %p66 = scmp.ne.s32.totalorder %s61, %s63
    %p67 = scmp.eq.s32.totalorder %s15, 0
    %p68 = por %p66, %p67
    %p69 = scmp.ne.s32.totalorder %s61, %s63
    %p70 = scmp.eq.s32.totalorder %s20, 1
    %p71 = por %p69, %p70
    %p72 = scmp.ne.s32.totalorder %s63, %s64
    %p73 = scmp.eq.s32.totalorder %s20, 0
    %p74 = por %p72, %p73
    %p75 = scmp.ne.s32.totalorder %s63, %s64
    %p76 = scmp.eq.s32.totalorder %s21, 1
    %p77 = por %p75, %p76
    %p79 = scmp.ne.s32.totalorder %s64, %s78
    %p80 = scmp.eq.s32.totalorder %s21, 0
    %p81 = por %p79, %p80
    %s83 = sadd.s32 %s82, 1
    %p86 = scmp.eq.s32.totalorder %s15, 1
    %p87 = scmp.ne.s32.totalorder %s82, %s84
    %p88 = scmp.eq.s32.totalorder %s15, 0
    %p89 = por %p87, %p88
    %p90 = scmp.ne.s32.totalorder %s82, %s84
    %p91 = scmp.eq.s32.totalorder %s20, 1
    %p92 = por %p90, %p91
    %p93 = scmp.ne.s32.totalorder %s84, %s85
    %p94 = scmp.eq.s32.totalorder %s20, 0
    %p95 = por %p93, %p94
    %p96 = scmp.ne.s32.totalorder %s84, %s85
    %p97 = scmp.eq.s32.totalorder %s21, 1
    %p98 = por %p96, %p97
    %p100 = scmp.ne.s32.totalorder %s85, %s99
    %p101 = scmp.eq.s32.totalorder %s21, 0
    %p102 = por %p100, %p101
    %s104 = sadd.s32 %s103, 1
    %p107 = scmp.eq.s32.totalorder %s15, 1
    %p108 = scmp.ne.s32.totalorder %s103, %s105
    %p109 = scmp.eq.s32.totalorder %s15, 0
    %p110 = por %p108, %p109
    %p111 = scmp.ne.s32.totalorder %s103, %s105
    %p112 = scmp.eq.s32.totalorder %s20, 1
    %p113 = por %p111, %p112
    %p114 = scmp.ne.s32.totalorder %s105, %s106
    %p115 = scmp.eq.s32.totalorder %s20, 0
    %p116 = por %p114, %p115
    %p117 = scmp.ne.s32.totalorder %s105, %s106
    %p118 = scmp.eq.s32.totalorder %s21, 1
    %p119 = por %p117, %p118
    %p121 = scmp.ne.s32.totalorder %s106, %s120
    %p122 = scmp.eq.s32.totalorder %s21, 0
    %p123 = por %p121, %p122
    %s125 = sadd.s32 %s124, 1
    %p128 = scmp.eq.s32.totalorder %s15, 1
    %p129 = scmp.ne.s32.totalorder %s124, %s126
    %p130 = scmp.eq.s32.totalorder %s15, 0
    %p131 = por %p129, %p130
    %p132 = scmp.ne.s32.totalorder %s124, %s126
    %p133 = scmp.eq.s32.totalorder %s20, 1
    %p134 = por %p132, %p133
    %p135 = scmp.ne.s32.totalorder %s126, %s127
    %p136 = scmp.eq.s32.totalorder %s20, 0
    %p137 = por %p135, %p136
    %p138 = scmp.ne.s32.totalorder %s126, %s127
    %p139 = scmp.eq.s32.totalorder %s21, 1
    %p140 = por %p138, %p139
    %p142 = scmp.ne.s32.totalorder %s127, %s141
    %p143 = scmp.eq.s32.totalorder %s21, 0
    %p144 = por %p142, %p143
    %s146 = sadd.s32 %s145, 1
    %p149 = scmp.eq.s32.totalorder %s15, 1
    %p150 = scmp.ne.s32.totalorder %s145, %s147
    %p151 = scmp.eq.s32.totalorder %s15, 0
    %p152 = por %p150, %p151
    %p153 = scmp.ne.s32.totalorder %s145, %s147
    %p154 = scmp.eq.s32.totalorder %s20, 1
    %p155 = por %p153, %p154
    %p156 = scmp.ne.s32.totalorder %s147, %s148
    %p157 = scmp.eq.s32.totalorder %s20, 0
    %p158 = por %p156, %p157
    %p159 = scmp.ne.s32.totalorder %s147, %s148
    %p160 = scmp.eq.s32.totalorder %s21, 1
    %p161 = por %p159, %p160
    %p163 = scmp.ne.s32.totalorder %s148, %s162
    %p164 = scmp.eq.s32.totalorder %s21, 0
    %p165 = por %p163, %p164
    %s167 = sadd.s32 %s166, 1
    %p170 = scmp.eq.s32.totalorder %s15, 1
    %p171 = scmp.ne.s32.totalorder %s166, %s168
    %p172 = scmp.eq.s32.totalorder %s15, 0
    %p173 = por %p171, %p172
    %p174 = scmp.ne.s32.totalorder %s166, %s168
    %p175 = scmp.eq.s32.totalorder %s20, 1
    %p176 = por %p174, %p175
    %p177 = scmp.ne.s32.totalorder %s168, %s169
    %p178 = scmp.eq.s32.totalorder %s20, 0
    %p179 = por %p177, %p178
    %p180 = scmp.ne.s32.totalorder %s168, %s169
    %p181 = scmp.eq.s32.totalorder %s21, 1
    %p182 = por %p180, %p181
    %p184 = scmp.ne.s32.totalorder %s169, %s183
    %p185 = scmp.eq.s32.totalorder %s21, 0
    %p186 = por %p184, %p185
    %s188 = sadd.s32 %s187, 1
    %p191 = scmp.eq.s32.totalorder %s15, 1
    %p192 = scmp.ne.s32.totalorder %s187, %s189
    %p193 = scmp.eq.s32.totalorder %s15, 0
    %p194 = por %p192, %p193
    %p195 = scmp.ne.s32.totalorder %s187, %s189
    %p196 = scmp.eq.s32.totalorder %s20, 1
    %p197 = por %p195, %p196
    %p198 = scmp.ne.s32.totalorder %s189, %s190
    %p199 = scmp.eq.s32.totalorder %s20, 0
    %p200 = por %p198, %p199
    %p201 = scmp.ne.s32.totalorder %s189, %s190
    %p202 = scmp.eq.s32.totalorder %s21, 1
    %p203 = por %p201, %p202
    %p205 = scmp.ne.s32.totalorder %s190, %s204
    %p206 = scmp.eq.s32.totalorder %s21, 0
    %p207 = por %p205, %p206
    %s208 = ssub.s32 %s22, %s34
    %s209 = ssub.s32 %s23, %s30
    %s210 = sor.u32 %s208, %s209
    %p211 = scmp.eq.s32.totalorder %s210, 0
    %s213 = sadd.s32 %s212, 1
    %s214 = scalar_select %p211, %s212, %s213
    %p217 = pneg %p211
    %p218 = scmp.eq.s32.totalorder %s15, 1
    %p219 = por %p217, %p218
    %p220 = scmp.ne.s32.totalorder %s212, %s215
    %p221 = scmp.eq.s32.totalorder %s15, 0
    %p222 = por %p220, %p221
    %p223 = scmp.ne.s32.totalorder %s212, %s215
    %p224 = scmp.eq.s32.totalorder %s20, 1
    %p225 = por %p223, %p224
    %p226 = scmp.ne.s32.totalorder %s215, %s216
    %p227 = scmp.eq.s32.totalorder %s20, 0
    %p228 = por %p226, %p227
    %p229 = scmp.ne.s32.totalorder %s215, %s216
    %p230 = scmp.eq.s32.totalorder %s21, 1
    %p231 = por %p229, %p230
    %p233 = scmp.ne.s32.totalorder %s216, %s232
    %p234 = scmp.eq.s32.totalorder %s21, 0
    %p235 = por %p233, %p234
    %p236 = scmp.le.s32.totalorder 1, %s15
    %p237 = scmp.lt.s32.totalorder %s15, 3
    %p238 = pnand %p236, %p237
    %p239 = pneg %p238
    // Predicated region
    $region9: #{nonlocal_block_forward.1} parent=5 // pred_check
      _
    $region10: #{nonlocal_block_forward.1} parent=5 // pred_check_branch
      %241 = sbr.rel (%p238) target = $region12
    $region11: #{nonlocal_block_forward.1} parent=5 // pred_region
      %s242 = ssub.s32 %s15, 1
      // Predicated region
      $region13: #{nonlocal_block_forward.1} parent=11 // pred_check
        %p243 = pneg %p74
      $region14: #{nonlocal_block_forward.1} parent=11 // pred_check_branch
        %245 = sbr.rel (%p243) target = $region16
      $region15: #{nonlocal_block_forward.1} parent=11 // pred_region
        _
      $region16: #{nonlocal_block_forward.1} parent=11 // pred_fallthru
        _
      // Predicated region
      $region17: #{nonlocal_block_forward.1} parent=11 // pred_check
        %p246 = pneg %p95
      $region18: #{nonlocal_block_forward.1} parent=11 // pred_check_branch
        %248 = sbr.rel (%p246) target = $region20
      $region19: #{nonlocal_block_forward.1} parent=11 // pred_region
        _
      $region20: #{nonlocal_block_forward.1} parent=11 // pred_fallthru
        _
      // Predicated region
      $region21: #{nonlocal_block_forward.1} parent=11 // pred_check
        %p249 = pneg %p116
      $region22: #{nonlocal_block_forward.1} parent=11 // pred_check_branch
        %251 = sbr.rel (%p249) target = $region24
      $region23: #{nonlocal_block_forward.1} parent=11 // pred_region
        _
      $region24: #{nonlocal_block_forward.1} parent=11 // pred_fallthru
        _
      // Predicated region
      $region25: #{nonlocal_block_forward.1} parent=11 // pred_check
        %p252 = pneg %p137
      $region26: #{nonlocal_block_forward.1} parent=11 // pred_check_branch
        %254 = sbr.rel (%p252) target = $region28
      $region27: #{nonlocal_block_forward.1} parent=11 // pred_region
        _
      $region28: #{nonlocal_block_forward.1} parent=11 // pred_fallthru
        _
      // Predicated region
      $region29: #{nonlocal_block_forward.1} parent=11 // pred_check
        %p255 = pneg %p158
      $region30: #{nonlocal_block_forward.1} parent=11 // pred_check_branch
        %257 = sbr.rel (%p255) target = $region32
      $region31: #{nonlocal_block_forward.1} parent=11 // pred_region
        _
      $region32: #{nonlocal_block_forward.1} parent=11 // pred_fallthru
        _
      // Predicated region
      $region33: #{nonlocal_block_forward.1} parent=11 // pred_check
        %p258 = pneg %p179
      $region34: #{nonlocal_block_forward.1} parent=11 // pred_check_branch
        %260 = sbr.rel (%p258) target = $region36
      $region35: #{nonlocal_block_forward.1} parent=11 // pred_region
        _
      $region36: #{nonlocal_block_forward.1} parent=11 // pred_fallthru
        _
      // Predicated region
      $region37: #{nonlocal_block_forward.1} parent=11 // pred_check
        %p261 = pneg %p200
      $region38: #{nonlocal_block_forward.1} parent=11 // pred_check_branch
        %263 = sbr.rel (%p261) target = $region40
      $region39: #{nonlocal_block_forward.1} parent=11 // pred_region
        _
      $region40: #{nonlocal_block_forward.1} parent=11 // pred_fallthru
        _
    $region12: #{nonlocal_block_forward.1} parent=5 // pred_fallthru
      _
    %p264 = scmp.lt.s32.totalorder %s15, 2
    // Predicated region
    $region41: #{nonlocal_block_forward.1} parent=5 // pred_check
      %p265 = pneg %p264
    $region42: #{nonlocal_block_forward.1} parent=5 // pred_check_branch
      %267 = sbr.rel (%p265) target = $region44
    $region43: #{nonlocal_block_forward.1} parent=5 // pred_region
      // Predicated region
      $region45: #{nonlocal_block_forward.1} parent=43 // pred_check
        %p268 = pneg %p47
      $region46: #{nonlocal_block_forward.1} parent=43 // pred_check_branch
        %270 = sbr.rel (%p268) target = $region48
      $region47: #{nonlocal_block_forward.1} parent=43 // pred_region
        %p271 = scmp.lt.s32.totalorder %s22, 1
        %s272 = scalar_select %p271, %s22, 1
        %s273 = smul.addr %s272, 8
        %s274 = smul.addr %s273, 8
        %s275 = scalar_lea.vmem %s0, %s274
      $region48: #{nonlocal_block_forward.1} parent=43 // pred_fallthru
        _
    $region44: #{nonlocal_block_forward.1} parent=5 // pred_fallthru
      _
    %p276 = scmp.le.s32.totalorder 1, %s15
    %p277 = scmp.lt.s32.totalorder %s15, 3
    %p278 = pnand %p276, %p277
    %p279 = pneg %p278
    // Predicated region
    $region49: #{nonlocal_block_forward.1} parent=5 // pred_check
      _
    $region50: #{nonlocal_block_forward.1} parent=5 // pred_check_branch
      %281 = sbr.rel (%p278) target = $region52
    $region51: #{nonlocal_block_forward.1} parent=5 // pred_region
      %s282 = ssub.s32 %s15, 1
      %p283 = scmp.lt.s32.totalorder %s24, 1
      %s284 = scalar_select %p283, %s24, 1
      %s285 = smul.addr %s284, 8
      %s286 = smul.addr %s285, 8
      %s287 = scalar_lea.vmem %s0, %s286
      %p288 = pneg %p53
      %p289 = pneg %p50
      %p290 = pneg %p74
      %p291 = pneg %p71
      %p292 = pneg %p95
      %p293 = pneg %p92
      %p294 = pneg %p116
      %p295 = pneg %p113
      %p296 = pneg %p137
      %p297 = pneg %p134
      %p298 = pneg %p158
      %p299 = pneg %p155
      %p300 = pneg %p179
      %p301 = pneg %p176
      %p302 = pneg %p200
      %p303 = pneg %p197
      %p304 = pneg %p228
      %p305 = pneg %p225
      %s306 = smul.u32 2, %s25
      %p307 = scmp.lt.s32.totalorder %s24, 1
      %s308 = scalar_select %p307, %s24, 1
      %p309 = scmp.lt.s32.totalorder %s306, 1
      %s310 = scalar_select %p309, %s306, 1
      %s311 = smul.addr %s308, 8
      %s312 = sadd.s32 %s310, %s311
      %s313 = smul.addr %s312, 8
      %s314 = scalar_lea.vmem %s8, %s313
      %p315 = scmp.lt.s32.totalorder %s24, 1
      %s316 = scalar_select %p315, %s24, 1
      %s317 = smul.addr %s316, 8
      %s318 = smul.addr %s317, 8
      %s319 = scalar_lea.vmem %s0, %s318
      %s320 = smul.u32 2, %s25
      %p321 = scmp.lt.s32.totalorder %s24, 1
      %s322 = scalar_select %p321, %s24, 1
      %p323 = scmp.lt.s32.totalorder %s320, 1
      %s324 = scalar_select %p323, %s320, 1
      %s325 = smul.addr %s322, 8
      %s326 = sadd.s32 %s324, %s325
      %s327 = smul.addr %s326, 8
      %s328 = scalar_lea.vmem %s8, %s327
      %s329 = smul.u32 2, %s25
      %p331 = scmp.eq.s32.totalorder %s25, 0
      // Predicated region
      $region53: #{nonlocal_block_forward.1} parent=51 // pred_check
        %p332 = pneg %p331
      $region54: #{nonlocal_block_forward.1} parent=51 // pred_check_branch
        %334 = sbr.rel (%p332) target = $region56
      $region55: #{nonlocal_block_forward.1} parent=51 // pred_region
        %v335 = vld [vmem:[%s319] sm:$0xff]
        %v336 = vld [vmem:[%s319 + $0x8] sm:$0xff]
        %v337 = vld [vmem:[%s319 + $0x10] sm:$0xff]
        %v338 = vld [vmem:[%s319 + $0x18] sm:$0xff]
        %v339 = vld [vmem:[%s319 + $0x20] sm:$0xff]
        %v340 = vld [vmem:[%s319 + $0x28] sm:$0xff]
        %v341 = vld [vmem:[%s319 + $0x30] sm:$0xff]
        %v342 = vld [vmem:[%s319 + $0x38] sm:$0xff]
        %v343 = vld [vmem:[%s2] sm:$0xf]
        %v344 = vld [vmem:[%s5] sm:$0xf]
        %346 = vset.pattern.permute.xlu0 0
        %347 = vperm.xlu0 %346, %v344
        %v348 = vpop.permute.xlu0 %347
        %vm350 = vcmask 261120
        %v352 = vsel %vm350, %v343, 0
        %354 = vmatpush.msra.mxu0 0.0
        %355 = vmatpush.msra.mxu0 0.0
        %356 = vmatpush.msra.mxu0 0.0
        %357 = vmatpush.msra.mxu0 0.0
        %358 = vmatpush.msra.mxu0 0.0
        %359 = vmatpush.msra.mxu0 0.0
        %360 = vmatpush.msra.mxu0 0.0
        %361 = vmatpush.msra.mxu0 0.0
        %362 = vmatpush.msra.mxu0 0.0
        %363 = vmatpush.msra.mxu0 0.0
        %364 = vmatpush.msra.mxu0 0.0
        %365 = vmatpush.msra.mxu0 0.0
        %366 = vmatpush.msra.mxu0 %v341
        %367 = vmatpush.msra.mxu0 %v339
        %368 = vmatpush.msra.mxu0 %v337
        %369 = vmatpush.msra.mxu0 %v335
        %370 = vmatmul.f32.gmra.mxu0 %v352
        %v371 = vpop.f32.mrf.mxu0
        %v372 = vadd.f32 %v348, %v371
        %373 = vdwg.mxu0
        %374 = vmatpush.msra.mxu0 0.0
        %375 = vmatpush.msra.mxu0 0.0
        %376 = vmatpush.msra.mxu0 0.0
        %377 = vmatpush.msra.mxu0 0.0
        %378 = vmatpush.msra.mxu0 0.0
        %379 = vmatpush.msra.mxu0 0.0
        %380 = vmatpush.msra.mxu0 0.0
        %381 = vmatpush.msra.mxu0 0.0
        %382 = vmatpush.msra.mxu0 0.0
        %383 = vmatpush.msra.mxu0 0.0
        %384 = vmatpush.msra.mxu0 0.0
        %385 = vmatpush.msra.mxu0 0.0
        %386 = vmatpush.msra.mxu0 %v342
        %387 = vmatpush.msra.mxu0 %v340
        %388 = vmatpush.msra.mxu0 %v338
        %389 = vmatpush.msra.mxu0 %v336
        %390 = vmatmul.f32.gmra.mxu0 %v352
        %v391 = vpop.f32.mrf.mxu0
        %v392 = vadd.f32 %v348, %v391
        %393 = vdwg.mxu0
        %v396 = vrot.slane %v392, 4
        %vm397 = vcmask 1043456
        %v398 = vsel %vm397, %v372, %v396
        %400 = vst [vmem:[#allocation2] sm:$0xff] %v398
        %v401 = vld [vmem:[%s3] sm:$0xff]
        %v402 = vld [vmem:[%s3 + $0x8] sm:$0xff]
        %v403 = vld [vmem:[%s3 + $0x10] sm:$0xff]
        %v404 = vld [vmem:[%s3 + $0x18] sm:$0xff]
        %v405 = vpack.c.bf16 %v402, %v401
        %v406 = vpack.c.bf16 %v404, %v403
        %v407 = vpack.c.bf16 %v337, %v335
        %v408 = vpack.c.bf16 %v338, %v336
        %v409 = vpack.c.bf16 %v341, %v339
        %v410 = vpack.c.bf16 %v342, %v340
        %v411 = vld [vmem:[%s6] sm:$0x1]
        %412 = vxpose.xlu0.b32.start [1/16] %v411, 128
        %413 = vxpose.xlu0.b32.cont [2/16] 0.0, 128
        %414 = vxpose.xlu0.b32.cont [3/16] 0.0, 128
        %415 = vxpose.xlu0.b32.cont [4/16] 0.0, 128
        %416 = vxpose.xlu0.b32.cont [5/16] 0.0, 128
        %417 = vxpose.xlu0.b32.cont [6/16] 0.0, 128
        %418 = vxpose.xlu0.b32.cont [7/16] 0.0, 128
        %419 = vxpose.xlu0.b32.cont [8/16] 0.0, 128
        %420 = vxpose.xlu0.b32.cont [9/16] 0.0, 128
        %421 = vxpose.xlu0.b32.cont [10/16] 0.0, 128
        %422 = vxpose.xlu0.b32.cont [11/16] 0.0, 128
        %423 = vxpose.xlu0.b32.cont [12/16] 0.0, 128
        %424 = vxpose.xlu0.b32.cont [13/16] 0.0, 128
        %425 = vxpose.xlu0.b32.cont [14/16] 0.0, 128
        %426 = vxpose.xlu0.b32.cont [15/16] 0.0, 128
        %427 = vxpose.xlu0.b32.end [16/16] 0.0, 128
        %v428 = vpop.trf.xlu0
        %v429 = vpop.trf.xlu0
        %v430 = vpop.trf.xlu0
        %v431 = vpop.trf.xlu0
        %v432 = vpop.trf.xlu0
        %v433 = vpop.trf.xlu0
        %v434 = vpop.trf.xlu0
        %v435 = vpop.trf.xlu0
        %v436 = vpop.trf.xlu0
        %v437 = vpop.trf.xlu0
        %v438 = vpop.trf.xlu0
        %v439 = vpop.trf.xlu0
        %v440 = vpop.trf.xlu0
        %v441 = vpop.trf.xlu0
        %v442 = vpop.trf.xlu0
        %v443 = vpop.trf.xlu0
        %445 = vset.pattern.permute.xlu0 0
        %446 = vperm.xlu0 %445, %v428
        %v447 = vpop.permute.xlu0 %446
        %450 = vset.pattern.permute.xlu0 0
        %451 = vperm.xlu0 %450, %v429
        %v452 = vpop.permute.xlu0 %451
        %455 = vset.pattern.permute.xlu0 0
        %456 = vperm.xlu0 %455, %v430
        %v457 = vpop.permute.xlu0 %456
        %460 = vset.pattern.permute.xlu0 0
        %461 = vperm.xlu0 %460, %v431
        %v462 = vpop.permute.xlu0 %461
        %v465 = vsel %vm350, %v405, 0
        %v468 = vsel %vm350, %v406, 0
        %470 = vmatpush.bf16.msra.mxu0 0
        %471 = vmatpush.bf16.msra.mxu0 0
        %472 = vmatpush.bf16.msra.mxu0 0
        %473 = vmatpush.bf16.msra.mxu0 0
        %474 = vmatpush.bf16.msra.mxu0 0
        %475 = vmatpush.bf16.msra.mxu0 0
        %476 = vmatpush.bf16.msra.mxu0 %v409
        %477 = vmatpush.bf16.msra.mxu0 %v407
        %478 = vmatmul.bf16.gmra.mxu0 %v465
        %v479 = vpop.f32.mrf.mxu0
        %v480 = vadd.f32 %v447, %v479
        %v481 = vpop.f32.mrf.mxu0
        %v482 = vadd.f32 %v452, %v481
        %483 = vmatmul.bf16.gmra.mxu0 %v468
        %v484 = vpop.f32.mrf.mxu0
        %v485 = vadd.f32 %v457, %v484
        %v486 = vpop.f32.mrf.mxu0
        %v487 = vadd.f32 %v462, %v486
        %488 = vdwg.mxu0
        %489 = vmatpush.bf16.msra.mxu0 0
        %490 = vmatpush.bf16.msra.mxu0 0
        %491 = vmatpush.bf16.msra.mxu0 0
        %492 = vmatpush.bf16.msra.mxu0 0
        %493 = vmatpush.bf16.msra.mxu0 0
        %494 = vmatpush.bf16.msra.mxu0 0
        %495 = vmatpush.bf16.msra.mxu0 %v410
        %496 = vmatpush.bf16.msra.mxu0 %v408
        %497 = vmatmul.bf16.gmra.mxu0 %v465
        %v498 = vpop.f32.mrf.mxu0
        %v499 = vadd.f32 %v447, %v498
        %v500 = vpop.f32.mrf.mxu0
        %v501 = vadd.f32 %v452, %v500
        %502 = vmatmul.bf16.gmra.mxu0 %v468
        %v503 = vpop.f32.mrf.mxu0
        %v504 = vadd.f32 %v457, %v503
        %v505 = vpop.f32.mrf.mxu0
        %v506 = vadd.f32 %v462, %v505
        %507 = vdwg.mxu0
        %508 = vxpose.xlu0.b32.start [1/16] %v480, 128
        %509 = vxpose.xlu0.b32.cont [2/16] %v482, 128
        %510 = vxpose.xlu0.b32.cont [3/16] %v485, 128
        %511 = vxpose.xlu0.b32.cont [4/16] %v487, 128
        %512 = vxpose.xlu0.b32.cont [5/16] 0.0, 128
        %513 = vxpose.xlu0.b32.cont [6/16] 0.0, 128
        %514 = vxpose.xlu0.b32.cont [7/16] 0.0, 128
        %515 = vxpose.xlu0.b32.cont [8/16] 0.0, 128
        %516 = vxpose.xlu0.b32.cont [9/16] 0.0, 128
        %517 = vxpose.xlu0.b32.cont [10/16] 0.0, 128
        %518 = vxpose.xlu0.b32.cont [11/16] 0.0, 128
        %519 = vxpose.xlu0.b32.cont [12/16] 0.0, 128
        %520 = vxpose.xlu0.b32.cont [13/16] 0.0, 128
        %521 = vxpose.xlu0.b32.cont [14/16] 0.0, 128
        %522 = vxpose.xlu0.b32.cont [15/16] 0.0, 128
        %523 = vxpose.xlu0.b32.end [16/16] 0.0, 128
        %v524 = vpop.trf.xlu0
        %v525 = vpop.trf.xlu0
        %v526 = vpop.trf.xlu0
        %v527 = vpop.trf.xlu0
        %v528 = vpop.trf.xlu0
        %v529 = vpop.trf.xlu0
        %v530 = vpop.trf.xlu0
        %v531 = vpop.trf.xlu0
        %v532 = vpop.trf.xlu0
        %v533 = vpop.trf.xlu0
        %v534 = vpop.trf.xlu0
        %v535 = vpop.trf.xlu0
        %v536 = vpop.trf.xlu0
        %v537 = vpop.trf.xlu0
        %v538 = vpop.trf.xlu0
        %v539 = vpop.trf.xlu0
        %540 = vxpose.xlu0.b32.start [1/16] %v499, 128
        %541 = vxpose.xlu0.b32.cont [2/16] %v501, 128
        %542 = vxpose.xlu0.b32.cont [3/16] %v504, 128
        %543 = vxpose.xlu0.b32.cont [4/16] %v506, 128
        %544 = vxpose.xlu0.b32.cont [5/16] 0.0, 128
        %545 = vxpose.xlu0.b32.cont [6/16] 0.0, 128
        %546 = vxpose.xlu0.b32.cont [7/16] 0.0, 128
        %547 = vxpose.xlu0.b32.cont [8/16] 0.0, 128
        %548 = vxpose.xlu0.b32.cont [9/16] 0.0, 128
        %549 = vxpose.xlu0.b32.cont [10/16] 0.0, 128
        %550 = vxpose.xlu0.b32.cont [11/16] 0.0, 128
        %551 = vxpose.xlu0.b32.cont [12/16] 0.0, 128
        %552 = vxpose.xlu0.b32.cont [13/16] 0.0, 128
        %553 = vxpose.xlu0.b32.cont [14/16] 0.0, 128
        %554 = vxpose.xlu0.b32.cont [15/16] 0.0, 128
        %555 = vxpose.xlu0.b32.end [16/16] 0.0, 128
        %v556 = vpop.trf.xlu0
        %v557 = vpop.trf.xlu0
        %v558 = vpop.trf.xlu0
        %v559 = vpop.trf.xlu0
        %v560 = vpop.trf.xlu0
        %v561 = vpop.trf.xlu0
        %v562 = vpop.trf.xlu0
        %v563 = vpop.trf.xlu0
        %v564 = vpop.trf.xlu0
        %v565 = vpop.trf.xlu0
        %v566 = vpop.trf.xlu0
        %v567 = vpop.trf.xlu0
        %v568 = vpop.trf.xlu0
        %v569 = vpop.trf.xlu0
        %v570 = vpop.trf.xlu0
        %v571 = vpop.trf.xlu0
        %v572 = vpack.c.bf16 %v524, %v524
        %v573 = vpack.c.bf16 %v525, %v525
        %v574 = vpack.c.bf16 %v526, %v526
        %v575 = vpack.c.bf16 %v527, %v527
        %v576 = vpack.c.bf16 %v528, %v528
        %v577 = vpack.c.bf16 %v529, %v529
        %v578 = vpack.c.bf16 %v530, %v530
        %v579 = vpack.c.bf16 %v531, %v531
        %v580 = vpack.c.bf16 %v532, %v532
        %v581 = vpack.c.bf16 %v533, %v533
        %v582 = vpack.c.bf16 %v534, %v534
        %v583 = vpack.c.bf16 %v535, %v535
        %v584 = vpack.c.bf16 %v536, %v536
        %v585 = vpack.c.bf16 %v537, %v537
        %v586 = vpack.c.bf16 %v538, %v538
        %v587 = vpack.c.bf16 %v539, %v539
        %v588 = vpack.c.bf16 %v556, %v556
        %v589 = vpack.c.bf16 %v557, %v557
        %v590 = vpack.c.bf16 %v558, %v558
        %v591 = vpack.c.bf16 %v559, %v559
        %v592 = vpack.c.bf16 %v560, %v560
        %v593 = vpack.c.bf16 %v561, %v561
        %v594 = vpack.c.bf16 %v562, %v562
        %v595 = vpack.c.bf16 %v563, %v563
        %v596 = vpack.c.bf16 %v564, %v564
        %v597 = vpack.c.bf16 %v565, %v565
        %v598 = vpack.c.bf16 %v566, %v566
        %v599 = vpack.c.bf16 %v567, %v567
        %v600 = vpack.c.bf16 %v568, %v568
        %v601 = vpack.c.bf16 %v569, %v569
        %v602 = vpack.c.bf16 %v570, %v570
        %v603 = vpack.c.bf16 %v571, %v571
        %vm604 = vcmask 257024
        %605 = vst.msk [vmem:[#allocation3] sm:$0xf] %vm604, %v572
        %606 = vst.msk [vmem:[#allocation3 + $0x4] sm:$0xf] %vm604, %v573
        %607 = vst.msk [vmem:[#allocation3 + $0x8] sm:$0xf] %vm604, %v574
        %608 = vst.msk [vmem:[#allocation3 + $0xc] sm:$0xf] %vm604, %v575
        %609 = vst.msk [vmem:[#allocation3 + $0x10] sm:$0xf] %vm604, %v576
        %610 = vst.msk [vmem:[#allocation3 + $0x14] sm:$0xf] %vm604, %v577
        %611 = vst.msk [vmem:[#allocation3 + $0x18] sm:$0xf] %vm604, %v578
        %612 = vst.msk [vmem:[#allocation3 + $0x1c] sm:$0xf] %vm604, %v579
        %613 = vst.msk [vmem:[#allocation3 + $0x20] sm:$0xf] %vm604, %v580
        %614 = vst.msk [vmem:[#allocation3 + $0x24] sm:$0xf] %vm604, %v581
        %615 = vst.msk [vmem:[#allocation3 + $0x28] sm:$0xf] %vm604, %v582
        %616 = vst.msk [vmem:[#allocation3 + $0x2c] sm:$0xf] %vm604, %v583
        %617 = vst.msk [vmem:[#allocation3 + $0x30] sm:$0xf] %vm604, %v584
        %618 = vst.msk [vmem:[#allocation3 + $0x34] sm:$0xf] %vm604, %v585
        %619 = vst.msk [vmem:[#allocation3 + $0x38] sm:$0xf] %vm604, %v586
        %620 = vst.msk [vmem:[#allocation3 + $0x3c] sm:$0xf] %vm604, %v587
        %621 = vst.msk [vmem:[#allocation3 + $0x40] sm:$0xf] %vm604, %v588
        %622 = vst.msk [vmem:[#allocation3 + $0x44] sm:$0xf] %vm604, %v589
        %623 = vst.msk [vmem:[#allocation3 + $0x48] sm:$0xf] %vm604, %v590
        %624 = vst.msk [vmem:[#allocation3 + $0x4c] sm:$0xf] %vm604, %v591
        %625 = vst.msk [vmem:[#allocation3 + $0x50] sm:$0xf] %vm604, %v592
        %626 = vst.msk [vmem:[#allocation3 + $0x54] sm:$0xf] %vm604, %v593
        %627 = vst.msk [vmem:[#allocation3 + $0x58] sm:$0xf] %vm604, %v594
        %628 = vst.msk [vmem:[#allocation3 + $0x5c] sm:$0xf] %vm604, %v595
        %629 = vst.msk [vmem:[#allocation3 + $0x60] sm:$0xf] %vm604, %v596
        %630 = vst.msk [vmem:[#allocation3 + $0x64] sm:$0xf] %vm604, %v597
        %631 = vst.msk [vmem:[#allocation3 + $0x68] sm:$0xf] %vm604, %v598
        %632 = vst.msk [vmem:[#allocation3 + $0x6c] sm:$0xf] %vm604, %v599
        %633 = vst.msk [vmem:[#allocation3 + $0x70] sm:$0xf] %vm604, %v600
        %634 = vst.msk [vmem:[#allocation3 + $0x74] sm:$0xf] %vm604, %v601
        %635 = vst.msk [vmem:[#allocation3 + $0x78] sm:$0xf] %vm604, %v602
        %636 = vst.msk [vmem:[#allocation3 + $0x7c] sm:$0xf] %vm604, %v603
      $region56: #{nonlocal_block_forward.1} parent=51 // pred_fallthru
        _
      %s637 = smul.u32 %s25, 256
      %s638 = sshra.s32 %s637, 7
      %s639 = sand.u32 %s637, 127
      %s640 = smul.addr %s638, 8
      %s641 = scalar_lea.vmem %s319, %s640
      %v642 = vld [vmem:[%s641] sm:$0xff]
      %v643 = vld [vmem:[%s641 + $0x8] sm:$0xff]
      %v644 = vld [vmem:[%s641 + $0x10] sm:$0xff]
      %v645 = vld [vmem:[%s641 + $0x18] sm:$0xff]
      %v646 = vld [vmem:[%s641 + $0x20] sm:$0xff]
      %v647 = vld [vmem:[%s641 + $0x28] sm:$0xff]
      %v648 = vld [vmem:[%s641 + $0x30] sm:$0xff]
      %v649 = vld [vmem:[%s641 + $0x38] sm:$0xff]
      %v650 = vld [vmem:[%s1] sm:$0xf]
      %v651 = vld [vmem:[%s4] sm:$0xf]
      %653 = vset.pattern.permute.xlu0 0
      %654 = vperm.xlu0 %653, %v651
      %v655 = vpop.permute.xlu0 %654
      %vm657 = vcmask 261120
      %v659 = vsel %vm657, %v650, 0
      %661 = vmatpush.msra.mxu0 0.0
      %662 = vmatpush.msra.mxu0 0.0
      %663 = vmatpush.msra.mxu0 0.0
      %664 = vmatpush.msra.mxu0 0.0
      %665 = vmatpush.msra.mxu0 0.0
      %666 = vmatpush.msra.mxu0 0.0
      %667 = vmatpush.msra.mxu0 0.0
      %668 = vmatpush.msra.mxu0 0.0
      %669 = vmatpush.msra.mxu0 0.0
      %670 = vmatpush.msra.mxu0 0.0
      %671 = vmatpush.msra.mxu0 0.0
      %672 = vmatpush.msra.mxu0 0.0
      %673 = vmatpush.msra.mxu0 %v648
      %674 = vmatpush.msra.mxu0 %v646
      %675 = vmatpush.msra.mxu0 %v644
      %676 = vmatpush.msra.mxu0 %v642
      %677 = vmatmul.f32.gmra.mxu0 %v659
      %v678 = vpop.f32.mrf.mxu0
      %v679 = vadd.f32 %v655, %v678
      %680 = vdwg.mxu0
      %681 = vmatpush.msra.mxu0 0.0
      %682 = vmatpush.msra.mxu0 0.0
      %683 = vmatpush.msra.mxu0 0.0
      %684 = vmatpush.msra.mxu0 0.0
      %685 = vmatpush.msra.mxu0 0.0
      %686 = vmatpush.msra.mxu0 0.0
      %687 = vmatpush.msra.mxu0 0.0
      %688 = vmatpush.msra.mxu0 0.0
      %689 = vmatpush.msra.mxu0 0.0
      %690 = vmatpush.msra.mxu0 0.0
      %691 = vmatpush.msra.mxu0 0.0
      %692 = vmatpush.msra.mxu0 0.0
      %693 = vmatpush.msra.mxu0 %v649
      %694 = vmatpush.msra.mxu0 %v647
      %695 = vmatpush.msra.mxu0 %v645
      %696 = vmatpush.msra.mxu0 %v643
      %697 = vmatmul.f32.gmra.mxu0 %v659
      %v698 = vpop.f32.mrf.mxu0
      %v699 = vadd.f32 %v655, %v698
      %700 = vdwg.mxu0
      %v701 = vld [vmem:[#allocation2] sm:$0xff]
      %702 = vxpose.xlu0.b32.start [1/16] %v679, 128
      %703 = vxpose.xlu0.b32.cont [2/16] 0.0, 128
      %704 = vxpose.xlu0.b32.cont [3/16] 0.0, 128
      %705 = vxpose.xlu0.b32.cont [4/16] 0.0, 128
      %706 = vxpose.xlu0.b32.cont [5/16] 0.0, 128
      %707 = vxpose.xlu0.b32.cont [6/16] 0.0, 128
      %708 = vxpose.xlu0.b32.cont [7/16] 0.0, 128
      %709 = vxpose.xlu0.b32.cont [8/16] 0.0, 128
      %710 = vxpose.xlu0.b32.cont [9/16] 0.0, 128
      %711 = vxpose.xlu0.b32.cont [10/16] 0.0, 128
      %712 = vxpose.xlu0.b32.cont [11/16] 0.0, 128
      %713 = vxpose.xlu0.b32.cont [12/16] 0.0, 128
      %714 = vxpose.xlu0.b32.cont [13/16] 0.0, 128
      %715 = vxpose.xlu0.b32.cont [14/16] 0.0, 128
      %716 = vxpose.xlu0.b32.cont [15/16] 0.0, 128
      %717 = vxpose.xlu0.b32.end [16/16] 0.0, 128
      %v718 = vpop.trf.xlu0
      %v719 = vpop.trf.xlu0
      %v720 = vpop.trf.xlu0
      %v721 = vpop.trf.xlu0
      %v722 = vpop.trf.xlu0
      %v723 = vpop.trf.xlu0
      %v724 = vpop.trf.xlu0
      %v725 = vpop.trf.xlu0
      %v726 = vpop.trf.xlu0
      %v727 = vpop.trf.xlu0
      %v728 = vpop.trf.xlu0
      %v729 = vpop.trf.xlu0
      %v730 = vpop.trf.xlu0
      %v731 = vpop.trf.xlu0
      %v732 = vpop.trf.xlu0
      %v733 = vpop.trf.xlu0
      %734 = vxpose.xlu0.b32.start [1/16] %v699, 128
      %735 = vxpose.xlu0.b32.cont [2/16] 0.0, 128
      %736 = vxpose.xlu0.b32.cont [3/16] 0.0, 128
      %737 = vxpose.xlu0.b32.cont [4/16] 0.0, 128
      %738 = vxpose.xlu0.b32.cont [5/16] 0.0, 128
      %739 = vxpose.xlu0.b32.cont [6/16] 0.0, 128
      %740 = vxpose.xlu0.b32.cont [7/16] 0.0, 128
      %741 = vxpose.xlu0.b32.cont [8/16] 0.0, 128
      %742 = vxpose.xlu0.b32.cont [9/16] 0.0, 128
      %743 = vxpose.xlu0.b32.cont [10/16] 0.0, 128
      %744 = vxpose.xlu0.b32.cont [11/16] 0.0, 128
      %745 = vxpose.xlu0.b32.cont [12/16] 0.0, 128
      %746 = vxpose.xlu0.b32.cont [13/16] 0.0, 128
      %747 = vxpose.xlu0.b32.cont [14/16] 0.0, 128
      %748 = vxpose.xlu0.b32.cont [15/16] 0.0, 128
      %749 = vxpose.xlu0.b32.end [16/16] 0.0, 128
      %v750 = vpop.trf.xlu0
      %v751 = vpop.trf.xlu0
      %v752 = vpop.trf.xlu0
      %v753 = vpop.trf.xlu0
      %v754 = vpop.trf.xlu0
      %v755 = vpop.trf.xlu0
      %v756 = vpop.trf.xlu0
      %v757 = vpop.trf.xlu0
      %v758 = vpop.trf.xlu0
      %v759 = vpop.trf.xlu0
      %v760 = vpop.trf.xlu0
      %v761 = vpop.trf.xlu0
      %v762 = vpop.trf.xlu0
      %v763 = vpop.trf.xlu0
      %v764 = vpop.trf.xlu0
      %v765 = vpop.trf.xlu0
      %767 = vst [vmem:[#allocation1] ss:$2 sm:$0xff] %v701
      %v768 = vld.sshfl [vmem:[#allocation1] sm:$0xff pattern:$0x75316420]
      %v769 = vld.sshfl [vmem:[#allocation1 + $0x8] sm:$0xff pattern:$0x75316420]
      %vm770 = vcmask 31744
      %v772 = vsel %vm770, %v718, 0
      %v775 = vsel %vm770, %v719, 0
      %v778 = vsel %vm770, %v720, 0
      %v781 = vsel %vm770, %v721, 0
      %v784 = vsel %vm770, %v722, 0
      %v787 = vsel %vm770, %v723, 0
      %v790 = vsel %vm770, %v724, 0
      %v793 = vsel %vm770, %v725, 0
      %v796 = vsel %vm770, %v726, 0
      %v799 = vsel %vm770, %v727, 0
      %v802 = vsel %vm770, %v728, 0
      %v805 = vsel %vm770, %v729, 0
      %v808 = vsel %vm770, %v730, 0
      %v811 = vsel %vm770, %v731, 0
      %v814 = vsel %vm770, %v732, 0
      %v817 = vsel %vm770, %v733, 0
      %v820 = vsel %vm770, %v750, 0
      %v823 = vsel %vm770, %v751, 0
      %v826 = vsel %vm770, %v752, 0
      %v829 = vsel %vm770, %v753, 0
      %v832 = vsel %vm770, %v754, 0
      %v835 = vsel %vm770, %v755, 0
      %v838 = vsel %vm770, %v756, 0
      %v841 = vsel %vm770, %v757, 0
      %v844 = vsel %vm770, %v758, 0
      %v847 = vsel %vm770, %v759, 0
      %v850 = vsel %vm770, %v760, 0
      %v853 = vsel %vm770, %v761, 0
      %v856 = vsel %vm770, %v762, 0
      %v859 = vsel %vm770, %v763, 0
      %v862 = vsel %vm770, %v764, 0
      %v865 = vsel %vm770, %v765, 0
      %vm867 = vcmask 1043456
      %v868 = vsel %vm867, %v768, 0
      %v870 = vsel %vm867, %v769, 0
      %872 = vmatpush.msra.mxu0 0.0
      %873 = vmatpush.msra.mxu0 0.0
      %874 = vmatpush.msra.mxu0 0.0
      %875 = vmatpush.msra.mxu0 0.0
      %876 = vmatpush.msra.mxu0 0.0
      %877 = vmatpush.msra.mxu0 0.0
      %878 = vmatpush.msra.mxu0 0.0
      %879 = vmatpush.msra.mxu0 0.0
      %880 = vmatpush.msra.mxu0 0.0
      %881 = vmatpush.msra.mxu0 0.0
      %882 = vmatpush.msra.mxu0 0.0
      %883 = vmatpush.msra.mxu0 0.0
      %884 = vmatpush.msra.mxu0 0.0
      %885 = vmatpush.msra.mxu0 0.0
      %886 = vmatpush.msra.mxu0 0.0
      %887 = vmatpush.msra.mxu0 %v868
      %888 = vmatmul.f32.gmra.mxu0 %v772
      %v889 = vpop.f32.mrf.mxu0
      %v890 = vadd.f32 0.0, %v889
      %891 = vmatmul.f32.gmra.mxu0 %v775
      %v892 = vpop.f32.mrf.mxu0
      %v893 = vadd.f32 0.0, %v892
      %894 = vmatmul.f32.gmra.mxu0 %v778
      %v895 = vpop.f32.mrf.mxu0
      %v896 = vadd.f32 0.0, %v895
      %897 = vmatmul.f32.gmra.mxu0 %v781
      %v898 = vpop.f32.mrf.mxu0
      %v899 = vadd.f32 0.0, %v898
      %900 = vmatmul.f32.gmra.mxu0 %v784
      %v901 = vpop.f32.mrf.mxu0
      %v902 = vadd.f32 0.0, %v901
      %903 = vmatmul.f32.gmra.mxu0 %v787
      %v904 = vpop.f32.mrf.mxu0
      %v905 = vadd.f32 0.0, %v904
      %906 = vmatmul.f32.gmra.mxu0 %v790
      %v907 = vpop.f32.mrf.mxu0
      %v908 = vadd.f32 0.0, %v907
      %909 = vmatmul.f32.gmra.mxu0 %v793
      %v910 = vpop.f32.mrf.mxu0
      %v911 = vadd.f32 0.0, %v910
      %912 = vmatmul.f32.gmra.mxu0 %v796
      %v913 = vpop.f32.mrf.mxu0
      %v914 = vadd.f32 0.0, %v913
      %915 = vmatmul.f32.gmra.mxu0 %v799
      %v916 = vpop.f32.mrf.mxu0
      %v917 = vadd.f32 0.0, %v916
      %918 = vmatmul.f32.gmra.mxu0 %v802
      %v919 = vpop.f32.mrf.mxu0
      %v920 = vadd.f32 0.0, %v919
      %921 = vmatmul.f32.gmra.mxu0 %v805
      %v922 = vpop.f32.mrf.mxu0
      %v923 = vadd.f32 0.0, %v922
      %924 = vmatmul.f32.gmra.mxu0 %v808
      %v925 = vpop.f32.mrf.mxu0
      %v926 = vadd.f32 0.0, %v925
      %927 = vmatmul.f32.gmra.mxu0 %v811
      %v928 = vpop.f32.mrf.mxu0
      %v929 = vadd.f32 0.0, %v928
      %930 = vmatmul.f32.gmra.mxu0 %v814
      %v931 = vpop.f32.mrf.mxu0
      %v932 = vadd.f32 0.0, %v931
      %933 = vmatmul.f32.gmra.mxu0 %v817
      %v934 = vpop.f32.mrf.mxu0
      %v935 = vadd.f32 0.0, %v934
      %936 = vmatmul.f32.gmra.mxu0 %v820
      %v937 = vpop.f32.mrf.mxu0
      %v938 = vadd.f32 0.0, %v937
      %939 = vmatmul.f32.gmra.mxu0 %v823
      %v940 = vpop.f32.mrf.mxu0
      %v941 = vadd.f32 0.0, %v940
      %942 = vmatmul.f32.gmra.mxu0 %v826
      %v943 = vpop.f32.mrf.mxu0
      %v944 = vadd.f32 0.0, %v943
      %945 = vmatmul.f32.gmra.mxu0 %v829
      %v946 = vpop.f32.mrf.mxu0
      %v947 = vadd.f32 0.0, %v946
      %948 = vmatmul.f32.gmra.mxu0 %v832
      %v949 = vpop.f32.mrf.mxu0
      %v950 = vadd.f32 0.0, %v949
      %951 = vmatmul.f32.gmra.mxu0 %v835
      %v952 = vpop.f32.mrf.mxu0
      %v953 = vadd.f32 0.0, %v952
      %954 = vmatmul.f32.gmra.mxu0 %v838
      %v955 = vpop.f32.mrf.mxu0
      %v956 = vadd.f32 0.0, %v955
      %957 = vmatmul.f32.gmra.mxu0 %v841
      %v958 = vpop.f32.mrf.mxu0
      %v959 = vadd.f32 0.0, %v958
      %960 = vmatmul.f32.gmra.mxu0 %v844
      %v961 = vpop.f32.mrf.mxu0
      %v962 = vadd.f32 0.0, %v961
      %963 = vmatmul.f32.gmra.mxu0 %v847
      %v964 = vpop.f32.mrf.mxu0
      %v965 = vadd.f32 0.0, %v964
      %966 = vmatmul.f32.gmra.mxu0 %v850
      %v967 = vpop.f32.mrf.mxu0
      %v968 = vadd.f32 0.0, %v967
      %969 = vmatmul.f32.gmra.mxu0 %v853
      %v970 = vpop.f32.mrf.mxu0
      %v971 = vadd.f32 0.0, %v970
      %972 = vmatmul.f32.gmra.mxu0 %v856
      %v973 = vpop.f32.mrf.mxu0
      %v974 = vadd.f32 0.0, %v973
      %975 = vmatmul.f32.gmra.mxu0 %v859
      %v976 = vpop.f32.mrf.mxu0
      %v977 = vadd.f32 0.0, %v976
      %978 = vmatmul.f32.gmra.mxu0 %v862
      %v979 = vpop.f32.mrf.mxu0
      %v980 = vadd.f32 0.0, %v979
      %981 = vmatmul.f32.gmra.mxu0 %v865
      %v982 = vpop.f32.mrf.mxu0
      %v983 = vadd.f32 0.0, %v982
      %984 = vdwg.mxu0
      %985 = vmatpush.msra.mxu0 0.0
      %986 = vmatpush.msra.mxu0 0.0
      %987 = vmatpush.msra.mxu0 0.0
      %988 = vmatpush.msra.mxu0 0.0
      %989 = vmatpush.msra.mxu0 0.0
      %990 = vmatpush.msra.mxu0 0.0
      %991 = vmatpush.msra.mxu0 0.0
      %992 = vmatpush.msra.mxu0 0.0
      %993 = vmatpush.msra.mxu0 0.0
      %994 = vmatpush.msra.mxu0 0.0
      %995 = vmatpush.msra.mxu0 0.0
      %996 = vmatpush.msra.mxu0 0.0
      %997 = vmatpush.msra.mxu0 0.0
      %998 = vmatpush.msra.mxu0 0.0
      %999 = vmatpush.msra.mxu0 0.0
      %1000 = vmatpush.msra.mxu0 %v870
      %1001 = vmatmul.f32.gmra.mxu0 %v772
      %v1002 = vpop.f32.mrf.mxu0
      %v1003 = vadd.f32 0.0, %v1002
      %1004 = vmatmul.f32.gmra.mxu0 %v775
      %v1005 = vpop.f32.mrf.mxu0
      %v1006 = vadd.f32 0.0, %v1005
      %1007 = vmatmul.f32.gmra.mxu0 %v778
      %v1008 = vpop.f32.mrf.mxu0
      %v1009 = vadd.f32 0.0, %v1008
      %1010 = vmatmul.f32.gmra.mxu0 %v781
      %v1011 = vpop.f32.mrf.mxu0
      %v1012 = vadd.f32 0.0, %v1011
      %1013 = vmatmul.f32.gmra.mxu0 %v784
      %v1014 = vpop.f32.mrf.mxu0
      %v1015 = vadd.f32 0.0, %v1014
      %1016 = vmatmul.f32.gmra.mxu0 %v787
      %v1017 = vpop.f32.mrf.mxu0
      %v1018 = vadd.f32 0.0, %v1017
      %1019 = vmatmul.f32.gmra.mxu0 %v790
      %v1020 = vpop.f32.mrf.mxu0
      %v1021 = vadd.f32 0.0, %v1020
      %1022 = vmatmul.f32.gmra.mxu0 %v793
      %v1023 = vpop.f32.mrf.mxu0
      %v1024 = vadd.f32 0.0, %v1023
      %1025 = vmatmul.f32.gmra.mxu0 %v796
      %v1026 = vpop.f32.mrf.mxu0
      %v1027 = vadd.f32 0.0, %v1026
      %1028 = vmatmul.f32.gmra.mxu0 %v799
      %v1029 = vpop.f32.mrf.mxu0
      %v1030 = vadd.f32 0.0, %v1029
      %1031 = vmatmul.f32.gmra.mxu0 %v802
      %v1032 = vpop.f32.mrf.mxu0
      %v1033 = vadd.f32 0.0, %v1032
      %1034 = vmatmul.f32.gmra.mxu0 %v805
      %v1035 = vpop.f32.mrf.mxu0
      %v1036 = vadd.f32 0.0, %v1035
      %1037 = vmatmul.f32.gmra.mxu0 %v808
      %v1038 = vpop.f32.mrf.mxu0
      %v1039 = vadd.f32 0.0, %v1038
      %1040 = vmatmul.f32.gmra.mxu0 %v811
      %v1041 = vpop.f32.mrf.mxu0
      %v1042 = vadd.f32 0.0, %v1041
      %1043 = vmatmul.f32.gmra.mxu0 %v814
      %v1044 = vpop.f32.mrf.mxu0
      %v1045 = vadd.f32 0.0, %v1044
      %1046 = vmatmul.f32.gmra.mxu0 %v817
      %v1047 = vpop.f32.mrf.mxu0
      %v1048 = vadd.f32 0.0, %v1047
      %1049 = vmatmul.f32.gmra.mxu0 %v820
      %v1050 = vpop.f32.mrf.mxu0
      %v1051 = vadd.f32 0.0, %v1050
      %1052 = vmatmul.f32.gmra.mxu0 %v823
      %v1053 = vpop.f32.mrf.mxu0
      %v1054 = vadd.f32 0.0, %v1053
      %1055 = vmatmul.f32.gmra.mxu0 %v826
      %v1056 = vpop.f32.mrf.mxu0
      %v1057 = vadd.f32 0.0, %v1056
      %1058 = vmatmul.f32.gmra.mxu0 %v829
      %v1059 = vpop.f32.mrf.mxu0
      %v1060 = vadd.f32 0.0, %v1059
      %1061 = vmatmul.f32.gmra.mxu0 %v832
      %v1062 = vpop.f32.mrf.mxu0
      %v1063 = vadd.f32 0.0, %v1062
      %1064 = vmatmul.f32.gmra.mxu0 %v835
      %v1065 = vpop.f32.mrf.mxu0
      %v1066 = vadd.f32 0.0, %v1065
      %1067 = vmatmul.f32.gmra.mxu0 %v838
      %v1068 = vpop.f32.mrf.mxu0
      %v1069 = vadd.f32 0.0, %v1068
      %1070 = vmatmul.f32.gmra.mxu0 %v841
      %v1071 = vpop.f32.mrf.mxu0
      %v1072 = vadd.f32 0.0, %v1071
      %1073 = vmatmul.f32.gmra.mxu0 %v844
      %v1074 = vpop.f32.mrf.mxu0
      %v1075 = vadd.f32 0.0, %v1074
      %1076 = vmatmul.f32.gmra.mxu0 %v847
      %v1077 = vpop.f32.mrf.mxu0
      %v1078 = vadd.f32 0.0, %v1077
      %1079 = vmatmul.f32.gmra.mxu0 %v850
      %v1080 = vpop.f32.mrf.mxu0
      %v1081 = vadd.f32 0.0, %v1080
      %1082 = vmatmul.f32.gmra.mxu0 %v853
      %v1083 = vpop.f32.mrf.mxu0
      %v1084 = vadd.f32 0.0, %v1083
      %1085 = vmatmul.f32.gmra.mxu0 %v856
      %v1086 = vpop.f32.mrf.mxu0
      %v1087 = vadd.f32 0.0, %v1086
      %1088 = vmatmul.f32.gmra.mxu0 %v859
      %v1089 = vpop.f32.mrf.mxu0
      %v1090 = vadd.f32 0.0, %v1089
      %1091 = vmatmul.f32.gmra.mxu0 %v862
      %v1092 = vpop.f32.mrf.mxu0
      %v1093 = vadd.f32 0.0, %v1092
      %1094 = vmatmul.f32.gmra.mxu0 %v865
      %v1095 = vpop.f32.mrf.mxu0
      %v1096 = vadd.f32 0.0, %v1095
      %1097 = vdwg.mxu0
      %v1098 = vmax.f32 %v890, %v1003
      %1099 = vmax.xlane.f32.xlu0 %v1098
      %v1100 = vpop.xlane.xlu0 %1099
      %v1101 = vmax.f32 %v893, %v1006
      %1102 = vmax.xlane.f32.xlu0 %v1101
      %v1103 = vpop.xlane.xlu0 %1102
      %v1104 = vmax.f32 %v896, %v1009
      %1105 = vmax.xlane.f32.xlu0 %v1104
      %v1106 = vpop.xlane.xlu0 %1105
      %v1107 = vmax.f32 %v899, %v1012
      %1108 = vmax.xlane.f32.xlu0 %v1107
      %v1109 = vpop.xlane.xlu0 %1108
      %v1110 = vmax.f32 %v902, %v1015
      %1111 = vmax.xlane.f32.xlu0 %v1110
      %v1112 = vpop.xlane.xlu0 %1111
      %v1113 = vmax.f32 %v905, %v1018
      %1114 = vmax.xlane.f32.xlu0 %v1113
      %v1115 = vpop.xlane.xlu0 %1114
      %v1116 = vmax.f32 %v908, %v1021
      %1117 = vmax.xlane.f32.xlu0 %v1116
      %v1118 = vpop.xlane.xlu0 %1117
      %v1119 = vmax.f32 %v911, %v1024
      %1120 = vmax.xlane.f32.xlu0 %v1119
      %v1121 = vpop.xlane.xlu0 %1120
      %v1122 = vmax.f32 %v914, %v1027
      %1123 = vmax.xlane.f32.xlu0 %v1122
      %v1124 = vpop.xlane.xlu0 %1123
      %v1125 = vmax.f32 %v917, %v1030
      %1126 = vmax.xlane.f32.xlu0 %v1125
      %v1127 = vpop.xlane.xlu0 %1126
      %v1128 = vmax.f32 %v920, %v1033
      %1129 = vmax.xlane.f32.xlu0 %v1128
      %v1130 = vpop.xlane.xlu0 %1129
      %v1131 = vmax.f32 %v923, %v1036
      %1132 = vmax.xlane.f32.xlu0 %v1131
      %v1133 = vpop.xlane.xlu0 %1132
      %v1134 = vmax.f32 %v926, %v1039
      %1135 = vmax.xlane.f32.xlu0 %v1134
      %v1136 = vpop.xlane.xlu0 %1135
      %v1137 = vmax.f32 %v929, %v1042
      %1138 = vmax.xlane.f32.xlu0 %v1137
      %v1139 = vpop.xlane.xlu0 %1138
      %v1140 = vmax.f32 %v932, %v1045
      %1141 = vmax.xlane.f32.xlu0 %v1140
      %v1142 = vpop.xlane.xlu0 %1141
      %v1143 = vmax.f32 %v935, %v1048
      %1144 = vmax.xlane.f32.xlu0 %v1143
      %v1145 = vpop.xlane.xlu0 %1144
      %v1146 = vmax.f32 %v938, %v1051
      %1147 = vmax.xlane.f32.xlu0 %v1146
      %v1148 = vpop.xlane.xlu0 %1147
      %v1149 = vmax.f32 %v941, %v1054
      %1150 = vmax.xlane.f32.xlu0 %v1149
      %v1151 = vpop.xlane.xlu0 %1150
      %v1152 = vmax.f32 %v944, %v1057
      %1153 = vmax.xlane.f32.xlu0 %v1152
      %v1154 = vpop.xlane.xlu0 %1153
      %v1155 = vmax.f32 %v947, %v1060
      %1156 = vmax.xlane.f32.xlu0 %v1155
      %v1157 = vpop.xlane.xlu0 %1156
      %v1158 = vmax.f32 %v950, %v1063
      %1159 = vmax.xlane.f32.xlu0 %v1158
      %v1160 = vpop.xlane.xlu0 %1159
      %v1161 = vmax.f32 %v953, %v1066
      %1162 = vmax.xlane.f32.xlu0 %v1161
      %v1163 = vpop.xlane.xlu0 %1162
      %v1164 = vmax.f32 %v956, %v1069
      %1165 = vmax.xlane.f32.xlu0 %v1164
      %v1166 = vpop.xlane.xlu0 %1165
      %v1167 = vmax.f32 %v959, %v1072
      %1168 = vmax.xlane.f32.xlu0 %v1167
      %v1169 = vpop.xlane.xlu0 %1168
      %v1170 = vmax.f32 %v962, %v1075
      %1171 = vmax.xlane.f32.xlu0 %v1170
      %v1172 = vpop.xlane.xlu0 %1171
      %v1173 = vmax.f32 %v965, %v1078
      %1174 = vmax.xlane.f32.xlu0 %v1173
      %v1175 = vpop.xlane.xlu0 %1174
      %v1176 = vmax.f32 %v968, %v1081
      %1177 = vmax.xlane.f32.xlu0 %v1176
      %v1178 = vpop.xlane.xlu0 %1177
      %v1179 = vmax.f32 %v971, %v1084
      %1180 = vmax.xlane.f32.xlu0 %v1179
      %v1181 = vpop.xlane.xlu0 %1180
      %v1182 = vmax.f32 %v974, %v1087
      %1183 = vmax.xlane.f32.xlu0 %v1182
      %v1184 = vpop.xlane.xlu0 %1183
      %v1185 = vmax.f32 %v977, %v1090
      %1186 = vmax.xlane.f32.xlu0 %v1185
      %v1187 = vpop.xlane.xlu0 %1186
      %v1188 = vmax.f32 %v980, %v1093
      %1189 = vmax.xlane.f32.xlu0 %v1188
      %v1190 = vpop.xlane.xlu0 %1189
      %v1191 = vmax.f32 %v983, %v1096
      %1192 = vmax.xlane.f32.xlu0 %v1191
      %v1193 = vpop.xlane.xlu0 %1192
      %v1194 = vsub.f32 %v890, %v1100
      %v1195 = vsub.f32 %v1003, %v1100
      %v1196 = vsub.f32 %v893, %v1103
      %v1197 = vsub.f32 %v1006, %v1103
      %v1198 = vsub.f32 %v896, %v1106
      %v1199 = vsub.f32 %v1009, %v1106
      %v1200 = vsub.f32 %v899, %v1109
      %v1201 = vsub.f32 %v1012, %v1109
      %v1202 = vsub.f32 %v902, %v1112
      %v1203 = vsub.f32 %v1015, %v1112
      %v1204 = vsub.f32 %v905, %v1115
      %v1205 = vsub.f32 %v1018, %v1115
      %v1206 = vsub.f32 %v908, %v1118
      %v1207 = vsub.f32 %v1021, %v1118
      %v1208 = vsub.f32 %v911, %v1121
      %v1209 = vsub.f32 %v1024, %v1121
      %v1210 = vsub.f32 %v914, %v1124
      %v1211 = vsub.f32 %v1027, %v1124
      %v1212 = vsub.f32 %v917, %v1127
      %v1213 = vsub.f32 %v1030, %v1127
      %v1214 = vsub.f32 %v920, %v1130
      %v1215 = vsub.f32 %v1033, %v1130
      %v1216 = vsub.f32 %v923, %v1133
      %v1217 = vsub.f32 %v1036, %v1133
      %v1218 = vsub.f32 %v926, %v1136
      %v1219 = vsub.f32 %v1039, %v1136
      %v1220 = vsub.f32 %v929, %v1139
      %v1221 = vsub.f32 %v1042, %v1139
      %v1222 = vsub.f32 %v932, %v1142
      %v1223 = vsub.f32 %v1045, %v1142
      %v1224 = vsub.f32 %v935, %v1145
      %v1225 = vsub.f32 %v1048, %v1145
      %v1226 = vsub.f32 %v938, %v1148
      %v1227 = vsub.f32 %v1051, %v1148
      %v1228 = vsub.f32 %v941, %v1151
      %v1229 = vsub.f32 %v1054, %v1151
      %v1230 = vsub.f32 %v944, %v1154
      %v1231 = vsub.f32 %v1057, %v1154
      %v1232 = vsub.f32 %v947, %v1157
      %v1233 = vsub.f32 %v1060, %v1157
      %v1234 = vsub.f32 %v950, %v1160
      %v1235 = vsub.f32 %v1063, %v1160
      %v1236 = vsub.f32 %v953, %v1163
      %v1237 = vsub.f32 %v1066, %v1163
      %v1238 = vsub.f32 %v956, %v1166
      %v1239 = vsub.f32 %v1069, %v1166
      %v1240 = vsub.f32 %v959, %v1169
      %v1241 = vsub.f32 %v1072, %v1169
      %v1242 = vsub.f32 %v962, %v1172
      %v1243 = vsub.f32 %v1075, %v1172
      %v1244 = vsub.f32 %v965, %v1175
      %v1245 = vsub.f32 %v1078, %v1175
      %v1246 = vsub.f32 %v968, %v1178
      %v1247 = vsub.f32 %v1081, %v1178
      %v1248 = vsub.f32 %v971, %v1181
      %v1249 = vsub.f32 %v1084, %v1181
      %v1250 = vsub.f32 %v974, %v1184
      %v1251 = vsub.f32 %v1087, %v1184
      %v1252 = vsub.f32 %v977, %v1187
      %v1253 = vsub.f32 %v1090, %v1187
      %v1254 = vsub.f32 %v980, %v1190
      %v1255 = vsub.f32 %v1093, %v1190
      %v1256 = vsub.f32 %v983, %v1193
      %v1257 = vsub.f32 %v1096, %v1193
      %v1258 = vmul.f32 %v1194, 1.442695
      %v1259 = vpow.pop %v1258
      %v1260 = vmul.f32 %v1195, 1.442695
      %v1261 = vpow.pop %v1260
      %v1262 = vmul.f32 %v1196, 1.442695
      %v1263 = vpow.pop %v1262
      %v1264 = vmul.f32 %v1197, 1.442695
      %v1265 = vpow.pop %v1264
      %v1266 = vmul.f32 %v1198, 1.442695
      %v1267 = vpow.pop %v1266
      %v1268 = vmul.f32 %v1199, 1.442695
      %v1269 = vpow.pop %v1268
      %v1270 = vmul.f32 %v1200, 1.442695
      %v1271 = vpow.pop %v1270
      %v1272 = vmul.f32 %v1201, 1.442695
      %v1273 = vpow.pop %v1272
      %v1274 = vmul.f32 %v1202, 1.442695
      %v1275 = vpow.pop %v1274
      %v1276 = vmul.f32 %v1203, 1.442695
      %v1277 = vpow.pop %v1276
      %v1278 = vmul.f32 %v1204, 1.442695
      %v1279 = vpow.pop %v1278
      %v1280 = vmul.f32 %v1205, 1.442695
      %v1281 = vpow.pop %v1280
      %v1282 = vmul.f32 %v1206, 1.442695
      %v1283 = vpow.pop %v1282
      %v1284 = vmul.f32 %v1207, 1.442695
      %v1285 = vpow.pop %v1284
      %v1286 = vmul.f32 %v1208, 1.442695
      %v1287 = vpow.pop %v1286
      %v1288 = vmul.f32 %v1209, 1.442695
      %v1289 = vpow.pop %v1288
      %v1290 = vmul.f32 %v1210, 1.442695
      %v1291 = vpow.pop %v1290
      %v1292 = vmul.f32 %v1211, 1.442695
      %v1293 = vpow.pop %v1292
      %v1294 = vmul.f32 %v1212, 1.442695
      %v1295 = vpow.pop %v1294
      %v1296 = vmul.f32 %v1213, 1.442695
      %v1297 = vpow.pop %v1296
      %v1298 = vmul.f32 %v1214, 1.442695
      %v1299 = vpow.pop %v1298
      %v1300 = vmul.f32 %v1215, 1.442695
      %v1301 = vpow.pop %v1300
      %v1302 = vmul.f32 %v1216, 1.442695
      %v1303 = vpow.pop %v1302
      %v1304 = vmul.f32 %v1217, 1.442695
      %v1305 = vpow.pop %v1304
      %v1306 = vmul.f32 %v1218, 1.442695
      %v1307 = vpow.pop %v1306
      %v1308 = vmul.f32 %v1219, 1.442695
      %v1309 = vpow.pop %v1308
      %v1310 = vmul.f32 %v1220, 1.442695
      %v1311 = vpow.pop %v1310
      %v1312 = vmul.f32 %v1221, 1.442695
      %v1313 = vpow.pop %v1312
      %v1314 = vmul.f32 %v1222, 1.442695
      %v1315 = vpow.pop %v1314
      %v1316 = vmul.f32 %v1223, 1.442695
      %v1317 = vpow.pop %v1316
      %v1318 = vmul.f32 %v1224, 1.442695
      %v1319 = vpow.pop %v1318
      %v1320 = vmul.f32 %v1225, 1.442695
      %v1321 = vpow.pop %v1320
      %v1322 = vmul.f32 %v1226, 1.442695
      %v1323 = vpow.pop %v1322
      %v1324 = vmul.f32 %v1227, 1.442695
      %v1325 = vpow.pop %v1324
      %v1326 = vmul.f32 %v1228, 1.442695
      %v1327 = vpow.pop %v1326
      %v1328 = vmul.f32 %v1229, 1.442695
      %v1329 = vpow.pop %v1328
      %v1330 = vmul.f32 %v1230, 1.442695
      %v1331 = vpow.pop %v1330
      %v1332 = vmul.f32 %v1231, 1.442695
      %v1333 = vpow.pop %v1332
      %v1334 = vmul.f32 %v1232, 1.442695
      %v1335 = vpow.pop %v1334
      %v1336 = vmul.f32 %v1233, 1.442695
      %v1337 = vpow.pop %v1336
      %v1338 = vmul.f32 %v1234, 1.442695
      %v1339 = vpow.pop %v1338
      %v1340 = vmul.f32 %v1235, 1.442695
      %v1341 = vpow.pop %v1340
      %v1342 = vmul.f32 %v1236, 1.442695
      %v1343 = vpow.pop %v1342
      %v1344 = vmul.f32 %v1237, 1.442695
      %v1345 = vpow.pop %v1344
      %v1346 = vmul.f32 %v1238, 1.442695
      %v1347 = vpow.pop %v1346
      %v1348 = vmul.f32 %v1239, 1.442695
      %v1349 = vpow.pop %v1348
      %v1350 = vmul.f32 %v1240, 1.442695
      %v1351 = vpow.pop %v1350
      %v1352 = vmul.f32 %v1241, 1.442695
      %v1353 = vpow.pop %v1352
      %v1354 = vmul.f32 %v1242, 1.442695
      %v1355 = vpow.pop %v1354
      %v1356 = vmul.f32 %v1243, 1.442695
      %v1357 = vpow.pop %v1356
      %v1358 = vmul.f32 %v1244, 1.442695
      %v1359 = vpow.pop %v1358
      %v1360 = vmul.f32 %v1245, 1.442695
      %v1361 = vpow.pop %v1360
      %v1362 = vmul.f32 %v1246, 1.442695
      %v1363 = vpow.pop %v1362
      %v1364 = vmul.f32 %v1247, 1.442695
      %v1365 = vpow.pop %v1364
      %v1366 = vmul.f32 %v1248, 1.442695
      %v1367 = vpow.pop %v1366
      %v1368 = vmul.f32 %v1249, 1.442695
      %v1369 = vpow.pop %v1368
      %v1370 = vmul.f32 %v1250, 1.442695
      %v1371 = vpow.pop %v1370
      %v1372 = vmul.f32 %v1251, 1.442695
      %v1373 = vpow.pop %v1372
      %v1374 = vmul.f32 %v1252, 1.442695
      %v1375 = vpow.pop %v1374
      %v1376 = vmul.f32 %v1253, 1.442695
      %v1377 = vpow.pop %v1376
      %v1378 = vmul.f32 %v1254, 1.442695
      %v1379 = vpow.pop %v1378
      %v1380 = vmul.f32 %v1255, 1.442695
      %v1381 = vpow.pop %v1380
      %v1382 = vmul.f32 %v1256, 1.442695
      %v1383 = vpow.pop %v1382
      %v1384 = vmul.f32 %v1257, 1.442695
      %v1385 = vpow.pop %v1384
      %v1386 = vadd.f32 %v1259, %v1261
      %1387 = vadd.xlane.f32.xlu0 %v1386
      %v1388 = vpop.xlane.xlu0 %1387
      %v1389 = vadd.f32 %v1263, %v1265
      %1390 = vadd.xlane.f32.xlu0 %v1389
      %v1391 = vpop.xlane.xlu0 %1390
      %v1392 = vadd.f32 %v1267, %v1269
      %1393 = vadd.xlane.f32.xlu0 %v1392
      %v1394 = vpop.xlane.xlu0 %1393
      %v1395 = vadd.f32 %v1271, %v1273
      %1396 = vadd.xlane.f32.xlu0 %v1395
      %v1397 = vpop.xlane.xlu0 %1396
      %v1398 = vadd.f32 %v1275, %v1277
      %1399 = vadd.xlane.f32.xlu0 %v1398
      %v1400 = vpop.xlane.xlu0 %1399
      %v1401 = vadd.f32 %v1279, %v1281
      %1402 = vadd.xlane.f32.xlu0 %v1401
      %v1403 = vpop.xlane.xlu0 %1402
      %v1404 = vadd.f32 %v1283, %v1285
      %1405 = vadd.xlane.f32.xlu0 %v1404
      %v1406 = vpop.xlane.xlu0 %1405
      %v1407 = vadd.f32 %v1287, %v1289
      %1408 = vadd.xlane.f32.xlu0 %v1407
      %v1409 = vpop.xlane.xlu0 %1408
      %v1410 = vadd.f32 %v1291, %v1293
      %1411 = vadd.xlane.f32.xlu0 %v1410
      %v1412 = vpop.xlane.xlu0 %1411
      %v1413 = vadd.f32 %v1295, %v1297
      %1414 = vadd.xlane.f32.xlu0 %v1413
      %v1415 = vpop.xlane.xlu0 %1414
      %v1416 = vadd.f32 %v1299, %v1301
      %1417 = vadd.xlane.f32.xlu0 %v1416
      %v1418 = vpop.xlane.xlu0 %1417
      %v1419 = vadd.f32 %v1303, %v1305
      %1420 = vadd.xlane.f32.xlu0 %v1419
      %v1421 = vpop.xlane.xlu0 %1420
      %v1422 = vadd.f32 %v1307, %v1309
      %1423 = vadd.xlane.f32.xlu0 %v1422
      %v1424 = vpop.xlane.xlu0 %1423
      %v1425 = vadd.f32 %v1311, %v1313
      %1426 = vadd.xlane.f32.xlu0 %v1425
      %v1427 = vpop.xlane.xlu0 %1426
      %v1428 = vadd.f32 %v1315, %v1317
      %1429 = vadd.xlane.f32.xlu0 %v1428
      %v1430 = vpop.xlane.xlu0 %1429
      %v1431 = vadd.f32 %v1319, %v1321
      %1432 = vadd.xlane.f32.xlu0 %v1431
      %v1433 = vpop.xlane.xlu0 %1432
      %v1434 = vadd.f32 %v1323, %v1325
      %1435 = vadd.xlane.f32.xlu0 %v1434
      %v1436 = vpop.xlane.xlu0 %1435
      %v1437 = vadd.f32 %v1327, %v1329
      %1438 = vadd.xlane.f32.xlu0 %v1437
      %v1439 = vpop.xlane.xlu0 %1438
      %v1440 = vadd.f32 %v1331, %v1333
      %1441 = vadd.xlane.f32.xlu0 %v1440
      %v1442 = vpop.xlane.xlu0 %1441
      %v1443 = vadd.f32 %v1335, %v1337
      %1444 = vadd.xlane.f32.xlu0 %v1443
      %v1445 = vpop.xlane.xlu0 %1444
      %v1446 = vadd.f32 %v1339, %v1341
      %1447 = vadd.xlane.f32.xlu0 %v1446
      %v1448 = vpop.xlane.xlu0 %1447
      %v1449 = vadd.f32 %v1343, %v1345
      %1450 = vadd.xlane.f32.xlu0 %v1449
      %v1451 = vpop.xlane.xlu0 %1450
      %v1452 = vadd.f32 %v1347, %v1349
      %1453 = vadd.xlane.f32.xlu0 %v1452
      %v1454 = vpop.xlane.xlu0 %1453
      %v1455 = vadd.f32 %v1351, %v1353
      %1456 = vadd.xlane.f32.xlu0 %v1455
      %v1457 = vpop.xlane.xlu0 %1456
      %v1458 = vadd.f32 %v1355, %v1357
      %1459 = vadd.xlane.f32.xlu0 %v1458
      %v1460 = vpop.xlane.xlu0 %1459
      %v1461 = vadd.f32 %v1359, %v1361
      %1462 = vadd.xlane.f32.xlu0 %v1461
      %v1463 = vpop.xlane.xlu0 %1462
      %v1464 = vadd.f32 %v1363, %v1365
      %1465 = vadd.xlane.f32.xlu0 %v1464
      %v1466 = vpop.xlane.xlu0 %1465
      %v1467 = vadd.f32 %v1367, %v1369
      %1468 = vadd.xlane.f32.xlu0 %v1467
      %v1469 = vpop.xlane.xlu0 %1468
      %v1470 = vadd.f32 %v1371, %v1373
      %1471 = vadd.xlane.f32.xlu0 %v1470
      %v1472 = vpop.xlane.xlu0 %1471
      %v1473 = vadd.f32 %v1375, %v1377
      %1474 = vadd.xlane.f32.xlu0 %v1473
      %v1475 = vpop.xlane.xlu0 %1474
      %v1476 = vadd.f32 %v1379, %v1381
      %1477 = vadd.xlane.f32.xlu0 %v1476
      %v1478 = vpop.xlane.xlu0 %1477
      %v1479 = vadd.f32 %v1383, %v1385
      %1480 = vadd.xlane.f32.xlu0 %v1479
      %v1481 = vpop.xlane.xlu0 %1480
      %v1482 = vpack.c.bf16 %v1263, %v1259
      %v1483 = vpack.c.bf16 %v1265, %v1261
      %v1484 = vpack.c.bf16 %v1271, %v1267
      %v1485 = vpack.c.bf16 %v1273, %v1269
      %v1486 = vpack.c.bf16 %v1279, %v1275
      %v1487 = vpack.c.bf16 %v1281, %v1277
      %v1488 = vpack.c.bf16 %v1287, %v1283
      %v1489 = vpack.c.bf16 %v1289, %v1285
      %v1490 = vpack.c.bf16 %v1295, %v1291
      %v1491 = vpack.c.bf16 %v1297, %v1293
      %v1492 = vpack.c.bf16 %v1303, %v1299
      %v1493 = vpack.c.bf16 %v1305, %v1301
      %v1494 = vpack.c.bf16 %v1311, %v1307
      %v1495 = vpack.c.bf16 %v1313, %v1309
      %v1496 = vpack.c.bf16 %v1319, %v1315
      %v1497 = vpack.c.bf16 %v1321, %v1317
      %v1498 = vpack.c.bf16 %v1327, %v1323
      %v1499 = vpack.c.bf16 %v1329, %v1325
      %v1500 = vpack.c.bf16 %v1335, %v1331
      %v1501 = vpack.c.bf16 %v1337, %v1333
      %v1502 = vpack.c.bf16 %v1343, %v1339
      %v1503 = vpack.c.bf16 %v1345, %v1341
      %v1504 = vpack.c.bf16 %v1351, %v1347
      %v1505 = vpack.c.bf16 %v1353, %v1349
      %v1506 = vpack.c.bf16 %v1359, %v1355
      %v1507 = vpack.c.bf16 %v1361, %v1357
      %v1508 = vpack.c.bf16 %v1367, %v1363
      %v1509 = vpack.c.bf16 %v1369, %v1365
      %v1510 = vpack.c.bf16 %v1375, %v1371
      %v1511 = vpack.c.bf16 %v1377, %v1373
      %v1512 = vpack.c.bf16 %v1383, %v1379
      %v1513 = vpack.c.bf16 %v1385, %v1381
      %v1514 = vld [vmem:[#allocation3] sm:$0xf]
      %v1515 = vld [vmem:[#allocation3 + $0x4] sm:$0xf]
      %v1516 = vld [vmem:[#allocation3 + $0x8] sm:$0xf]
      %v1517 = vld [vmem:[#allocation3 + $0xc] sm:$0xf]
      %v1518 = vld [vmem:[#allocation3 + $0x10] sm:$0xf]
      %v1519 = vld [vmem:[#allocation3 + $0x14] sm:$0xf]
      %v1520 = vld [vmem:[#allocation3 + $0x18] sm:$0xf]
      %v1521 = vld [vmem:[#allocation3 + $0x1c] sm:$0xf]
      %v1522 = vld [vmem:[#allocation3 + $0x20] sm:$0xf]
      %v1523 = vld [vmem:[#allocation3 + $0x24] sm:$0xf]
      %v1524 = vld [vmem:[#allocation3 + $0x28] sm:$0xf]
      %v1525 = vld [vmem:[#allocation3 + $0x2c] sm:$0xf]
      %v1526 = vld [vmem:[#allocation3 + $0x30] sm:$0xf]
      %v1527 = vld [vmem:[#allocation3 + $0x34] sm:$0xf]
      %v1528 = vld [vmem:[#allocation3 + $0x38] sm:$0xf]
      %v1529 = vld [vmem:[#allocation3 + $0x3c] sm:$0xf]
      %v1530 = vld [vmem:[#allocation3 + $0x40] sm:$0xf]
      %v1531 = vld [vmem:[#allocation3 + $0x44] sm:$0xf]
      %v1532 = vld [vmem:[#allocation3 + $0x48] sm:$0xf]
      %v1533 = vld [vmem:[#allocation3 + $0x4c] sm:$0xf]
      %v1534 = vld [vmem:[#allocation3 + $0x50] sm:$0xf]
      %v1535 = vld [vmem:[#allocation3 + $0x54] sm:$0xf]
      %v1536 = vld [vmem:[#allocation3 + $0x58] sm:$0xf]
      %v1537 = vld [vmem:[#allocation3 + $0x5c] sm:$0xf]
      %v1538 = vld [vmem:[#allocation3 + $0x60] sm:$0xf]
      %v1539 = vld [vmem:[#allocation3 + $0x64] sm:$0xf]
      %v1540 = vld [vmem:[#allocation3 + $0x68] sm:$0xf]
      %v1541 = vld [vmem:[#allocation3 + $0x6c] sm:$0xf]
      %v1542 = vld [vmem:[#allocation3 + $0x70] sm:$0xf]
      %v1543 = vld [vmem:[#allocation3 + $0x74] sm:$0xf]
      %v1544 = vld [vmem:[#allocation3 + $0x78] sm:$0xf]
      %v1545 = vld [vmem:[#allocation3 + $0x7c] sm:$0xf]
      %v1578 = vunpack.c.l.b16 %v1514
      %v1579 = vunpack.c.l.b16 %v1515
      %v1580 = vunpack.c.l.b16 %v1516
      %v1581 = vunpack.c.l.b16 %v1517
      %v1582 = vunpack.c.l.b16 %v1518
      %v1583 = vunpack.c.l.b16 %v1519
      %v1584 = vunpack.c.l.b16 %v1520
      %v1585 = vunpack.c.l.b16 %v1521
      %v1586 = vunpack.c.l.b16 %v1522
      %v1587 = vunpack.c.l.b16 %v1523
      %v1588 = vunpack.c.l.b16 %v1524
      %v1589 = vunpack.c.l.b16 %v1525
      %v1590 = vunpack.c.l.b16 %v1526
      %v1591 = vunpack.c.l.b16 %v1527
      %v1592 = vunpack.c.l.b16 %v1528
      %v1593 = vunpack.c.l.b16 %v1529
      %v1594 = vunpack.c.l.b16 %v1530
      %v1595 = vunpack.c.l.b16 %v1531
      %v1596 = vunpack.c.l.b16 %v1532
      %v1597 = vunpack.c.l.b16 %v1533
      %v1598 = vunpack.c.l.b16 %v1534
      %v1599 = vunpack.c.l.b16 %v1535
      %v1600 = vunpack.c.l.b16 %v1536
      %v1601 = vunpack.c.l.b16 %v1537
      %v1602 = vunpack.c.l.b16 %v1538
      %v1603 = vunpack.c.l.b16 %v1539
      %v1604 = vunpack.c.l.b16 %v1540
      %v1605 = vunpack.c.l.b16 %v1541
      %v1606 = vunpack.c.l.b16 %v1542
      %v1607 = vunpack.c.l.b16 %v1543
      %v1608 = vunpack.c.l.b16 %v1544
      %v1609 = vunpack.c.l.b16 %v1545
      %v1610 = vpack.c.b16 %v1579, %v1578
      %v1611 = vpack.c.b16 %v1581, %v1580
      %v1612 = vpack.c.b16 %v1583, %v1582
      %v1613 = vpack.c.b16 %v1585, %v1584
      %v1614 = vpack.c.b16 %v1587, %v1586
      %v1615 = vpack.c.b16 %v1589, %v1588
      %v1616 = vpack.c.b16 %v1591, %v1590
      %v1617 = vpack.c.b16 %v1593, %v1592
      %v1618 = vpack.c.b16 %v1595, %v1594
      %v1619 = vpack.c.b16 %v1597, %v1596
      %v1620 = vpack.c.b16 %v1599, %v1598
      %v1621 = vpack.c.b16 %v1601, %v1600
      %v1622 = vpack.c.b16 %v1603, %v1602
      %v1623 = vpack.c.b16 %v1605, %v1604
      %v1624 = vpack.c.b16 %v1607, %v1606
      %v1625 = vpack.c.b16 %v1609, %v1608
      %1642 = vmatpush.bf16.msra.mxu0 %v1617
      %1643 = vmatpush.bf16.msra.mxu0 %v1616
      %1644 = vmatpush.bf16.msra.mxu0 %v1615
      %1645 = vmatpush.bf16.msra.mxu0 %v1614
      %1646 = vmatpush.bf16.msra.mxu0 %v1613
      %1647 = vmatpush.bf16.msra.mxu0 %v1612
      %1648 = vmatpush.bf16.msra.mxu0 %v1611
      %1649 = vmatpush.bf16.msra.mxu0 %v1610
      %1650 = vmatmul.bf16.gmra.mxu0 %v1482
      %v1651 = vpop.f32.mrf.mxu0
      %v1652 = vadd.f32 0.0, %v1651
      %v1653 = vpop.f32.mrf.mxu0
      %v1654 = vadd.f32 0.0, %v1653
      %1655 = vmatmul.bf16.gmra.mxu0 %v1484
      %v1656 = vpop.f32.mrf.mxu0
      %v1657 = vadd.f32 0.0, %v1656
      %v1658 = vpop.f32.mrf.mxu0
      %v1659 = vadd.f32 0.0, %v1658
      %1660 = vmatmul.bf16.gmra.mxu0 %v1486
      %v1661 = vpop.f32.mrf.mxu0
      %v1662 = vadd.f32 0.0, %v1661
      %v1663 = vpop.f32.mrf.mxu0
      %v1664 = vadd.f32 0.0, %v1663
      %1665 = vmatmul.bf16.gmra.mxu0 %v1488
      %v1666 = vpop.f32.mrf.mxu0
      %v1667 = vadd.f32 0.0, %v1666
      %v1668 = vpop.f32.mrf.mxu0
      %v1669 = vadd.f32 0.0, %v1668
      %1670 = vmatmul.bf16.gmra.mxu0 %v1490
      %v1671 = vpop.f32.mrf.mxu0
      %v1672 = vadd.f32 0.0, %v1671
      %v1673 = vpop.f32.mrf.mxu0
      %v1674 = vadd.f32 0.0, %v1673
      %1675 = vmatmul.bf16.gmra.mxu0 %v1492
      %v1676 = vpop.f32.mrf.mxu0
      %v1677 = vadd.f32 0.0, %v1676
      %v1678 = vpop.f32.mrf.mxu0
      %v1679 = vadd.f32 0.0, %v1678
      %1680 = vmatmul.bf16.gmra.mxu0 %v1494
      %v1681 = vpop.f32.mrf.mxu0
      %v1682 = vadd.f32 0.0, %v1681
      %v1683 = vpop.f32.mrf.mxu0
      %v1684 = vadd.f32 0.0, %v1683
      %1685 = vmatmul.bf16.gmra.mxu0 %v1496
      %v1686 = vpop.f32.mrf.mxu0
      %v1687 = vadd.f32 0.0, %v1686
      %v1688 = vpop.f32.mrf.mxu0
      %v1689 = vadd.f32 0.0, %v1688
      %1690 = vmatmul.bf16.gmra.mxu0 %v1498
      %v1691 = vpop.f32.mrf.mxu0
      %v1692 = vadd.f32 0.0, %v1691
      %v1693 = vpop.f32.mrf.mxu0
      %v1694 = vadd.f32 0.0, %v1693
      %1695 = vmatmul.bf16.gmra.mxu0 %v1500
      %v1696 = vpop.f32.mrf.mxu0
      %v1697 = vadd.f32 0.0, %v1696
      %v1698 = vpop.f32.mrf.mxu0
      %v1699 = vadd.f32 0.0, %v1698
      %1700 = vmatmul.bf16.gmra.mxu0 %v1502
      %v1701 = vpop.f32.mrf.mxu0
      %v1702 = vadd.f32 0.0, %v1701
      %v1703 = vpop.f32.mrf.mxu0
      %v1704 = vadd.f32 0.0, %v1703
      %1705 = vmatmul.bf16.gmra.mxu0 %v1504
      %v1706 = vpop.f32.mrf.mxu0
      %v1707 = vadd.f32 0.0, %v1706
      %v1708 = vpop.f32.mrf.mxu0
      %v1709 = vadd.f32 0.0, %v1708
      %1710 = vmatmul.bf16.gmra.mxu0 %v1506
      %v1711 = vpop.f32.mrf.mxu0
      %v1712 = vadd.f32 0.0, %v1711
      %v1713 = vpop.f32.mrf.mxu0
      %v1714 = vadd.f32 0.0, %v1713
      %1715 = vmatmul.bf16.gmra.mxu0 %v1508
      %v1716 = vpop.f32.mrf.mxu0
      %v1717 = vadd.f32 0.0, %v1716
      %v1718 = vpop.f32.mrf.mxu0
      %v1719 = vadd.f32 0.0, %v1718
      %1720 = vmatmul.bf16.gmra.mxu0 %v1510
      %v1721 = vpop.f32.mrf.mxu0
      %v1722 = vadd.f32 0.0, %v1721
      %v1723 = vpop.f32.mrf.mxu0
      %v1724 = vadd.f32 0.0, %v1723
      %1725 = vmatmul.bf16.gmra.mxu0 %v1512
      %v1726 = vpop.f32.mrf.mxu0
      %v1727 = vadd.f32 0.0, %v1726
      %v1728 = vpop.f32.mrf.mxu0
      %v1729 = vadd.f32 0.0, %v1728
      %1730 = vdwg.mxu0
      %1731 = vmatpush.bf16.msra.mxu0 %v1625
      %1732 = vmatpush.bf16.msra.mxu0 %v1624
      %1733 = vmatpush.bf16.msra.mxu0 %v1623
      %1734 = vmatpush.bf16.msra.mxu0 %v1622
      %1735 = vmatpush.bf16.msra.mxu0 %v1621
      %1736 = vmatpush.bf16.msra.mxu0 %v1620
      %1737 = vmatpush.bf16.msra.mxu0 %v1619
      %1738 = vmatpush.bf16.msra.mxu0 %v1618
      %1739 = vmatmul.bf16.gmra.mxu0 %v1483
      %v1740 = vpop.f32.mrf.mxu0
      %v1741 = vadd.f32 %v1652, %v1740
      %v1742 = vpop.f32.mrf.mxu0
      %v1743 = vadd.f32 %v1654, %v1742
      %1744 = vmatmul.bf16.gmra.mxu0 %v1485
      %v1745 = vpop.f32.mrf.mxu0
      %v1746 = vadd.f32 %v1657, %v1745
      %v1747 = vpop.f32.mrf.mxu0
      %v1748 = vadd.f32 %v1659, %v1747
      %1749 = vmatmul.bf16.gmra.mxu0 %v1487
      %v1750 = vpop.f32.mrf.mxu0
      %v1751 = vadd.f32 %v1662, %v1750
      %v1752 = vpop.f32.mrf.mxu0
      %v1753 = vadd.f32 %v1664, %v1752
      %1754 = vmatmul.bf16.gmra.mxu0 %v1489
      %v1755 = vpop.f32.mrf.mxu0
      %v1756 = vadd.f32 %v1667, %v1755
      %v1757 = vpop.f32.mrf.mxu0
      %v1758 = vadd.f32 %v1669, %v1757
      %1759 = vmatmul.bf16.gmra.mxu0 %v1491
      %v1760 = vpop.f32.mrf.mxu0
      %v1761 = vadd.f32 %v1672, %v1760
      %v1762 = vpop.f32.mrf.mxu0
      %v1763 = vadd.f32 %v1674, %v1762
      %1764 = vmatmul.bf16.gmra.mxu0 %v1493
      %v1765 = vpop.f32.mrf.mxu0
      %v1766 = vadd.f32 %v1677, %v1765
      %v1767 = vpop.f32.mrf.mxu0
      %v1768 = vadd.f32 %v1679, %v1767
      %1769 = vmatmul.bf16.gmra.mxu0 %v1495
      %v1770 = vpop.f32.mrf.mxu0
      %v1771 = vadd.f32 %v1682, %v1770
      %v1772 = vpop.f32.mrf.mxu0
      %v1773 = vadd.f32 %v1684, %v1772
      %1774 = vmatmul.bf16.gmra.mxu0 %v1497
      %v1775 = vpop.f32.mrf.mxu0
      %v1776 = vadd.f32 %v1687, %v1775
      %v1777 = vpop.f32.mrf.mxu0
      %v1778 = vadd.f32 %v1689, %v1777
      %1779 = vmatmul.bf16.gmra.mxu0 %v1499
      %v1780 = vpop.f32.mrf.mxu0
      %v1781 = vadd.f32 %v1692, %v1780
      %v1782 = vpop.f32.mrf.mxu0
      %v1783 = vadd.f32 %v1694, %v1782
      %1784 = vmatmul.bf16.gmra.mxu0 %v1501
      %v1785 = vpop.f32.mrf.mxu0
      %v1786 = vadd.f32 %v1697, %v1785
      %v1787 = vpop.f32.mrf.mxu0
      %v1788 = vadd.f32 %v1699, %v1787
      %1789 = vmatmul.bf16.gmra.mxu0 %v1503
      %v1790 = vpop.f32.mrf.mxu0
      %v1791 = vadd.f32 %v1702, %v1790
      %v1792 = vpop.f32.mrf.mxu0
      %v1793 = vadd.f32 %v1704, %v1792
      %1794 = vmatmul.bf16.gmra.mxu0 %v1505
      %v1795 = vpop.f32.mrf.mxu0
      %v1796 = vadd.f32 %v1707, %v1795
      %v1797 = vpop.f32.mrf.mxu0
      %v1798 = vadd.f32 %v1709, %v1797
      %1799 = vmatmul.bf16.gmra.mxu0 %v1507
      %v1800 = vpop.f32.mrf.mxu0
      %v1801 = vadd.f32 %v1712, %v1800
      %v1802 = vpop.f32.mrf.mxu0
      %v1803 = vadd.f32 %v1714, %v1802
      %1804 = vmatmul.bf16.gmra.mxu0 %v1509
      %v1805 = vpop.f32.mrf.mxu0
      %v1806 = vadd.f32 %v1717, %v1805
      %v1807 = vpop.f32.mrf.mxu0
      %v1808 = vadd.f32 %v1719, %v1807
      %1809 = vmatmul.bf16.gmra.mxu0 %v1511
      %v1810 = vpop.f32.mrf.mxu0
      %v1811 = vadd.f32 %v1722, %v1810
      %v1812 = vpop.f32.mrf.mxu0
      %v1813 = vadd.f32 %v1724, %v1812
      %1814 = vmatmul.bf16.gmra.mxu0 %v1513
      %v1815 = vpop.f32.mrf.mxu0
      %v1816 = vadd.f32 %v1727, %v1815
      %v1817 = vpop.f32.mrf.mxu0
      %v1818 = vadd.f32 %v1729, %v1817
      %1819 = vdwg.mxu0
      %v1820 = vrcp.pop %v1388
      %v1821 = vrcp.pop %v1391
      %v1822 = vrcp.pop %v1394
      %v1823 = vrcp.pop %v1397
      %v1824 = vrcp.pop %v1400
      %v1825 = vrcp.pop %v1403
      %v1826 = vrcp.pop %v1406
      %v1827 = vrcp.pop %v1409
      %v1828 = vrcp.pop %v1412
      %v1829 = vrcp.pop %v1415
      %v1830 = vrcp.pop %v1418
      %v1831 = vrcp.pop %v1421
      %v1832 = vrcp.pop %v1424
      %v1833 = vrcp.pop %v1427
      %v1834 = vrcp.pop %v1430
      %v1835 = vrcp.pop %v1433
      %v1836 = vrcp.pop %v1436
      %v1837 = vrcp.pop %v1439
      %v1838 = vrcp.pop %v1442
      %v1839 = vrcp.pop %v1445
      %v1840 = vrcp.pop %v1448
      %v1841 = vrcp.pop %v1451
      %v1842 = vrcp.pop %v1454
      %v1843 = vrcp.pop %v1457
      %v1844 = vrcp.pop %v1460
      %v1845 = vrcp.pop %v1463
      %v1846 = vrcp.pop %v1466
      %v1847 = vrcp.pop %v1469
      %v1848 = vrcp.pop %v1472
      %v1849 = vrcp.pop %v1475
      %v1850 = vrcp.pop %v1478
      %v1851 = vrcp.pop %v1481
      %v1852 = vmul.f32 %v1741, %v1820
      %v1853 = vmul.f32 %v1743, %v1821
      %v1854 = vmul.f32 %v1746, %v1822
      %v1855 = vmul.f32 %v1748, %v1823
      %v1856 = vmul.f32 %v1751, %v1824
      %v1857 = vmul.f32 %v1753, %v1825
      %v1858 = vmul.f32 %v1756, %v1826
      %v1859 = vmul.f32 %v1758, %v1827
      %v1860 = vmul.f32 %v1761, %v1828
      %v1861 = vmul.f32 %v1763, %v1829
      %v1862 = vmul.f32 %v1766, %v1830
      %v1863 = vmul.f32 %v1768, %v1831
      %v1864 = vmul.f32 %v1771, %v1832
      %v1865 = vmul.f32 %v1773, %v1833
      %v1866 = vmul.f32 %v1776, %v1834
      %v1867 = vmul.f32 %v1778, %v1835
      %v1868 = vmul.f32 %v1781, %v1836
      %v1869 = vmul.f32 %v1783, %v1837
      %v1870 = vmul.f32 %v1786, %v1838
      %v1871 = vmul.f32 %v1788, %v1839
      %v1872 = vmul.f32 %v1791, %v1840
      %v1873 = vmul.f32 %v1793, %v1841
      %v1874 = vmul.f32 %v1796, %v1842
      %v1875 = vmul.f32 %v1798, %v1843
      %v1876 = vmul.f32 %v1801, %v1844
      %v1877 = vmul.f32 %v1803, %v1845
      %v1878 = vmul.f32 %v1806, %v1846
      %v1879 = vmul.f32 %v1808, %v1847
      %v1880 = vmul.f32 %v1811, %v1848
      %v1881 = vmul.f32 %v1813, %v1849
      %v1882 = vmul.f32 %v1816, %v1850
      %v1883 = vmul.f32 %v1818, %v1851
      %s1884 = sld [smem:[#allocation4]]
      %1885 = vxpose.xlu0.b32.start [1/16] %v1852, 128
      %1886 = vxpose.xlu0.b32.cont [2/16] %v1853, 128
      %1887 = vxpose.xlu0.b32.cont [3/16] %v1854, 128
      %1888 = vxpose.xlu0.b32.cont [4/16] %v1855, 128
      %1889 = vxpose.xlu0.b32.cont [5/16] %v1856, 128
      %1890 = vxpose.xlu0.b32.cont [6/16] %v1857, 128
      %1891 = vxpose.xlu0.b32.cont [7/16] %v1858, 128
      %1892 = vxpose.xlu0.b32.cont [8/16] %v1859, 128
      %1893 = vxpose.xlu0.b32.cont [9/16] %v1860, 128
      %1894 = vxpose.xlu0.b32.cont [10/16] %v1861, 128
      %1895 = vxpose.xlu0.b32.cont [11/16] %v1862, 128
      %1896 = vxpose.xlu0.b32.cont [12/16] %v1863, 128
      %1897 = vxpose.xlu0.b32.cont [13/16] %v1864, 128
      %1898 = vxpose.xlu0.b32.cont [14/16] %v1865, 128
      %1899 = vxpose.xlu0.b32.cont [15/16] %v1866, 128
      %1900 = vxpose.xlu0.b32.end [16/16] %v1867, 128
      %v1901 = vpop.trf.xlu0
      %v1902 = vpop.trf.xlu0
      %v1903 = vpop.trf.xlu0
      %v1904 = vpop.trf.xlu0
      %v1905 = vpop.trf.xlu0
      %v1906 = vpop.trf.xlu0
      %v1907 = vpop.trf.xlu0
      %v1908 = vpop.trf.xlu0
      %v1909 = vpop.trf.xlu0
      %v1910 = vpop.trf.xlu0
      %v1911 = vpop.trf.xlu0
      %v1912 = vpop.trf.xlu0
      %v1913 = vpop.trf.xlu0
      %v1914 = vpop.trf.xlu0
      %v1915 = vpop.trf.xlu0
      %v1916 = vpop.trf.xlu0
      %1917 = vxpose.xlu0.b32.start [1/16] %v1868, 128
      %1918 = vxpose.xlu0.b32.cont [2/16] %v1869, 128
      %1919 = vxpose.xlu0.b32.cont [3/16] %v1870, 128
      %1920 = vxpose.xlu0.b32.cont [4/16] %v1871, 128
      %1921 = vxpose.xlu0.b32.cont [5/16] %v1872, 128
      %1922 = vxpose.xlu0.b32.cont [6/16] %v1873, 128
      %1923 = vxpose.xlu0.b32.cont [7/16] %v1874, 128
      %1924 = vxpose.xlu0.b32.cont [8/16] %v1875, 128
      %1925 = vxpose.xlu0.b32.cont [9/16] %v1876, 128
      %1926 = vxpose.xlu0.b32.cont [10/16] %v1877, 128
      %1927 = vxpose.xlu0.b32.cont [11/16] %v1878, 128
      %1928 = vxpose.xlu0.b32.cont [12/16] %v1879, 128
      %1929 = vxpose.xlu0.b32.cont [13/16] %v1880, 128
      %1930 = vxpose.xlu0.b32.cont [14/16] %v1881, 128
      %1931 = vxpose.xlu0.b32.cont [15/16] %v1882, 128
      %1932 = vxpose.xlu0.b32.end [16/16] %v1883, 128
      %v1933 = vpop.trf.xlu0
      %v1934 = vpop.trf.xlu0
      %v1935 = vpop.trf.xlu0
      %v1936 = vpop.trf.xlu0
      %v1937 = vpop.trf.xlu0
      %v1938 = vpop.trf.xlu0
      %v1939 = vpop.trf.xlu0
      %v1940 = vpop.trf.xlu0
      %v1941 = vpop.trf.xlu0
      %v1942 = vpop.trf.xlu0
      %v1943 = vpop.trf.xlu0
      %v1944 = vpop.trf.xlu0
      %v1945 = vpop.trf.xlu0
      %v1946 = vpop.trf.xlu0
      %v1947 = vpop.trf.xlu0
      %v1948 = vpop.trf.xlu0
      %v1949 = vstv %s1884
      %v1950 = vmul.f32 %v1949, %v1901
      %v1951 = vmul.f32 %v1949, %v1933
      %v1952 = vmul.f32 %v1949, %v1902
      %v1953 = vmul.f32 %v1949, %v1934
      %v1954 = vmul.f32 %v1949, %v1903
      %v1955 = vmul.f32 %v1949, %v1935
      %v1956 = vmul.f32 %v1949, %v1904
      %v1957 = vmul.f32 %v1949, %v1936
      %v1958 = vadd.f32 %v1950, %v642
      %v1959 = vadd.f32 %v1951, %v643
      %v1960 = vadd.f32 %v1952, %v644
      %v1961 = vadd.f32 %v1953, %v645
      %v1962 = vadd.f32 %v1954, %v646
      %v1963 = vadd.f32 %v1955, %v647
      %v1964 = vadd.f32 %v1956, %v648
      %v1965 = vadd.f32 %v1957, %v649
      %1966 = vst [vmem:[%s328] sm:$0xff] %v1958
      %1967 = vst [vmem:[%s328 + $0x8] sm:$0xff] %v1959
      %1968 = vst [vmem:[%s328 + $0x10] sm:$0xff] %v1960
      %1969 = vst [vmem:[%s328 + $0x18] sm:$0xff] %v1961
      %1970 = vst [vmem:[%s328 + $0x20] sm:$0xff] %v1962
      %1971 = vst [vmem:[%s328 + $0x28] sm:$0xff] %v1963
      %1972 = vst [vmem:[%s328 + $0x30] sm:$0xff] %v1964
      %1973 = vst [vmem:[%s328 + $0x38] sm:$0xff] %v1965
      %s1974 = smul.u32 2, %s25
      %p1975 = scmp.lt.s32.totalorder %s24, 1
      %s1976 = scalar_select %p1975, %s24, 1
      %p1977 = scmp.lt.s32.totalorder %s1974, 1
      %s1978 = scalar_select %p1977, %s1974, 1
      %s1979 = smul.addr %s1976, 8
      %s1980 = sadd.s32 %s1978, %s1979
      %s1981 = smul.addr %s1980, 8
      %s1982 = scalar_lea.vmem %s8, %s1981
      // Predicated region
      $region57: #{nonlocal_block_forward.1} parent=51 // pred_check
        %p1983 = pneg %p225
      $region58: #{nonlocal_block_forward.1} parent=51 // pred_check_branch
        %1985 = sbr.rel (%p1983) target = $region60
      $region59: #{nonlocal_block_forward.1} parent=51 // pred_region
        %s1986 = smul.u32 2, %s25
      $region60: #{nonlocal_block_forward.1} parent=51 // pred_fallthru
        _
    $region52: #{nonlocal_block_forward.1} parent=5 // pred_fallthru
      _
    %p1987 = scmp.le.s32.totalorder 2, %s15
    // Predicated region
    $region61: #{nonlocal_block_forward.1} parent=5 // pred_check
      %p1988 = pneg %p1987
    $region62: #{nonlocal_block_forward.1} parent=5 // pred_check_branch
      %1990 = sbr.rel (%p1988) target = $region64
    $region63: #{nonlocal_block_forward.1} parent=5 // pred_region
      %s1991 = ssub.s32 %s15, 2
      // Predicated region
      $region65: #{nonlocal_block_forward.1} parent=63 // pred_check
        %p1992 = pneg %p231
      $region66: #{nonlocal_block_forward.1} parent=63 // pred_check_branch
        %1994 = sbr.rel (%p1992) target = $region68
      $region67: #{nonlocal_block_forward.1} parent=63 // pred_region
        %s1995 = smul.u32 2, %s27
        %p1996 = scmp.lt.s32.totalorder %s26, 1
        %s1997 = scalar_select %p1996, %s26, 1
        %p1998 = scmp.lt.s32.totalorder %s1995, 1
        %s1999 = scalar_select %p1998, %s1995, 1
        %s2000 = smul.addr %s1997, 8
        %s2001 = sadd.s32 %s1999, %s2000
        %s2002 = smul.addr %s2001, 8
        %s2003 = scalar_lea.vmem %s8, %s2002
      $region68: #{nonlocal_block_forward.1} parent=63 // pred_fallthru
        _
    $region64: #{nonlocal_block_forward.1} parent=5 // pred_fallthru
      _
  $region6: #{nonlocal_block_forward.1} parent=0 // loop_footer
    %s19 = sadd.s32 1, %s15
  $region7: #{nonlocal_block_forward.1} parent=0 // loop_footer_branch
    %14 = sbr.rel target = $region3
  $region8: #{nonlocal_block_forward.1} parent=0 // loop_exit
    _

</llo_original>
